<compile_context>
chip_gen: v7x
topology: tpu7x:2x2x1
jax: 0.10.0
libtpu: 0.0.40
codegen_flags: <defaults>
</compile_context>

<pallas_src>
import functools

import jax
import jax.numpy as jnp
import numpy as np
from jax.experimental import pallas as pl
from jax.experimental.pallas import tpu as pltpu  # noqa: F401  (memory spaces etc.)


def _graph_constructor_kernel(nv1_ref, nv2_ref, w1_ref, b1_ref, w2_ref, b2_ref,
                              adj_ref, cols_ref, vals_ref, *, alpha, k, nbits):
    f32 = jnp.float32

    # nodevec = tanh(alpha * (x @ W + b))   (PyTorch Linear, W pre-transposed)
    nv1 = jnp.tanh(alpha * (jnp.dot(nv1_ref[...], w1_ref[...],
                                    preferred_element_type=f32) + b1_ref[...]))
    nv2 = jnp.tanh(alpha * (jnp.dot(nv2_ref[...], w2_ref[...],
                                    preferred_element_type=f32) + b2_ref[...]))

    # a = nv1 @ nv2^T - nv2 @ nv1^T : two MXU contractions on the feature axis,
    # avoiding an (n, n) f32 transpose through the XLU (which the top-k lane
    # reductions below also need).
    contract = (((1,), (1,)), ((), ()))
    a = (jax.lax.dot_general(nv1, nv2, contract, preferred_element_type=f32)
         - jax.lax.dot_general(nv2, nv1, contract, preferred_element_type=f32))

    adj = jnp.maximum(jnp.tanh(alpha * a), 0.0)          # relu(tanh(alpha * a))

    # ---- packed-key top-k ----------------------------------------------------
    # adj >= 0, so its int32 bit pattern is monotone in the value.  Replace the
    # low `nbits` bits with the column index; one cross-lane max per iteration
    # then yields both the max value (high bits) and its column (low bits),
    # ties broken deterministically by the larger column index.  Keys are
    # unique per row, so exactly one position matches row_max each iteration.
    low_mask = jnp.int32((1 << nbits) - 1)
    high_mask = jnp.int32(~((1 << nbits) - 1))
    col = jax.lax.broadcasted_iota(jnp.int32, adj.shape, 1)
    adj_bits = jax.lax.bitcast_convert_type(adj, jnp.int32)
    work = jnp.bitwise_or(jnp.bitwise_and(adj_bits, high_mask), col)

    for t in range(k):                         # k small & static -> unrolled
        row_max = jnp.max(work, axis=1, keepdims=True)              # (n, 1)
        cols_ref[:, t:t + 1] = jnp.bitwise_and(row_max, low_mask)   # column j
        # value with low nbits of the mantissa cleared (exactly 0.0 when adj==0)
        vals_ref[:, t:t + 1] = jax.lax.bitcast_convert_type(
            jnp.bitwise_and(row_max, high_mask), f32)
        work = jnp.where(work == row_max, jnp.int32(-1), work)      # suppress

    # Selected positions are exactly those suppressed to -1 (all keys >= 0 else).
    adj_ref[...] = jnp.where(work < 0, adj, 0.0)


def graph_constructor_forward(idx, emb1, emb2, w1, b1, w2, b2, *, alpha=3.0, k=3):
    """Returns (adj, edge_indexes) matching the PyTorch forward semantics.

    Tie-breaking among near-equal adjacency values is deterministic (by column
    index) instead of torch.rand*0.01; reported top-k `vals` are the adjacency
    values with the low ceil(log2(n)) mantissa bits cleared (<=127 ulp).
    """
    # glue: embedding lookup (tiny XLA gather)
    nv1 = jnp.take(emb1, idx, axis=0)            # (n, dim)
    nv2 = jnp.take(emb2, idx, axis=0)            # (n, dim)
    n, dim = nv1.shape
    assert k <= n, "graph_constructor requires k <= number of nodes"
    nbits = max((n - 1).bit_length(), 1)         # bits needed for a column index

    full = lambda shape: pl.BlockSpec(shape, lambda: (0,) * len(shape))
    kernel = functools.partial(_graph_constructor_kernel,
                               alpha=alpha, k=k, nbits=nbits)

    # TODO(synk): for n >> 1024, add a row-block grid (out_spec (TM, n)) with the
    # row axis marked "parallel" (2 TCs on v7x); size TM per generation
    # (TM~128 + vmem_limit_bytes<=~48MiB on v7x's 64 MiB VMEM, TM 256-512 on
    # v6e/v5e) and cast the score-matmul operands to bf16 on v6e/v7x.
    adj, sel_cols, sel_vals = pl.pallas_call(
        kernel,
        out_shape=(
            jax.ShapeDtypeStruct((n, n), jnp.float32),
            jax.ShapeDtypeStruct((n, k), jnp.int32),
            jax.ShapeDtypeStruct((n, k), jnp.float32),
        ),
        grid=(),
        in_specs=[
            full((n, dim)),      # nodevec1 (pre-Linear)
            full((n, dim)),      # nodevec2 (pre-Linear)
            full((dim, dim)),    # W1 (pre-transposed)
            full((1, dim)),      # b1
            full((dim, dim)),    # W2 (pre-transposed)
            full((1, dim)),      # b2
        ],
        out_specs=(full((n, n)), full((n, k)), full((n, k))),
    )(nv1, nv2, w1, b1.reshape(1, dim), w2, b2.reshape(1, dim))

    # TODO(synk): edge_indexes is an inherently dynamically-sized Python list;
    # built on host from the small (n, k) top-k outputs (no full-adj scan).
    cols = np.asarray(sel_cols)
    vals = np.asarray(sel_vals)
    edge_j, edge_i = [], []
    for i in range(cols.shape[0]):
        js = sorted(int(cols[i, t]) for t in range(cols.shape[1]) if vals[i, t] > 0.0)
        edge_j.extend(js)                 # edge_indexes[0] = column j
        edge_i.extend([i] * len(js))      # edge_indexes[1] = row i
    edge_indexes = [edge_j, edge_i]
    return adj, edge_indexes


if __name__ == "__main__":
    nnodes, n, dim, k, alpha = 160, 128, 32, 3, 3.0

    key = jax.random.PRNGKey(0)
    k_e1, k_e2, k_w1, k_b1, k_w2, k_b2 = jax.random.split(key, 6)

    # deterministic synthetic parameters (shapes per module __init__, static_feat=None)
    emb1 = jax.random.normal(k_e1, (nnodes, dim), jnp.float32)
    emb2 = jax.random.normal(k_e2, (nnodes, dim), jnp.float32)
    bound = 1.0 / np.sqrt(dim)
    # nn.Linear(dim, dim): weight (dim_out, dim_in); stored transposed for x @ W
    w1 = jax.random.uniform(k_w1, (dim, dim), jnp.float32, -bound, bound)
    b1 = jax.random.uniform(k_b1, (dim,), jnp.float32, -bound, bound)
    w2 = jax.random.uniform(k_w2, (dim, dim), jnp.float32, -bound, bound)
    b2 = jax.random.uniform(k_b2, (dim,), jnp.float32, -bound, bound)

    idx = jnp.arange(n, dtype=jnp.int32)

    adj, edge_indexes = graph_constructor_forward(
        idx, emb1, emb2, w1, b1, w2, b2, alpha=alpha, k=k)
    jax.block_until_ready(adj)

    assert adj.shape == (n, n)
    # each row keeps at most k nonzero entries
    nnz_per_row = jnp.sum((adj > 0).astype(jnp.int32), axis=1)
    assert int(jnp.max(nnz_per_row)) <= k
    # masked adjacency is non-negative (relu) and edges are consistent with it
    assert float(jnp.min(adj)) >= 0.0
    assert len(edge_indexes[0]) == len(edge_indexes[1])
    assert len(edge_indexes[0]) == int(jnp.sum((adj > 0).astype(jnp.int32)))
    print("KERNEL_OK")
</pallas_src>

<mosaic_0001>
module attributes {stable_mosaic.version = 11 : i64} {
  func.func @_graph_constructor_kernel(%arg0: memref<128x32xf32, #tpu.memory_space<vmem>>, %arg1: memref<128x32xf32, #tpu.memory_space<vmem>>, %arg2: memref<32x32xf32, #tpu.memory_space<vmem>>, %arg3: memref<1x32xf32, #tpu.memory_space<vmem>>, %arg4: memref<32x32xf32, #tpu.memory_space<vmem>>, %arg5: memref<1x32xf32, #tpu.memory_space<vmem>>, %arg6: memref<128x128xf32, #tpu.memory_space<vmem>>, %arg7: memref<128x3xi32, #tpu.memory_space<vmem>>, %arg8: memref<128x3xf32, #tpu.memory_space<vmem>>) attributes {dimension_semantics = [], scalar_prefetch = 0 : i64, scratch_operands = 0 : i64, tpu.core_type = #tpu.core_type<tc>} {
    %c0 = arith.constant 0 : index
    %c0_0 = arith.constant 0 : index
    %0 = vector.load %arg0[%c0, %c0_0] : memref<128x32xf32, #tpu.memory_space<vmem>>, vector<128x32xf32>
    %c0_1 = arith.constant 0 : index
    %c0_2 = arith.constant 0 : index
    %1 = vector.load %arg2[%c0_1, %c0_2] : memref<32x32xf32, #tpu.memory_space<vmem>>, vector<32x32xf32>
    %cst = arith.constant dense<0.000000e+00> : vector<128x32xf32>
    %2 = tpu.matmul %0, %1, %cst {dimension_numbers = #tpu.dot_dimension_numbers<[1], [0], [0], [1], [0, 0, 1, 1], [], []>} : vector<128x32xf32>, vector<32x32xf32>, vector<128x32xf32> -> vector<128x32xf32>
    %c0_3 = arith.constant 0 : index
    %c0_4 = arith.constant 0 : index
    %3 = vector.load %arg3[%c0_3, %c0_4] : memref<1x32xf32, #tpu.memory_space<vmem>>, vector<1x32xf32>
    %4 = vector.broadcast %3 : vector<1x32xf32> to vector<128x32xf32>
    %5 = arith.addf %2, %4 : vector<128x32xf32>
    %cst_5 = arith.constant 3.000000e+00 : f32
    %6 = vector.broadcast %cst_5 : f32 to vector<128x32xf32>
    %7 = arith.mulf %6, %5 : vector<128x32xf32>
    %8 = math.tanh %7 : vector<128x32xf32>
    %c0_6 = arith.constant 0 : index
    %c0_7 = arith.constant 0 : index
    %9 = vector.load %arg1[%c0_6, %c0_7] : memref<128x32xf32, #tpu.memory_space<vmem>>, vector<128x32xf32>
    %c0_8 = arith.constant 0 : index
    %c0_9 = arith.constant 0 : index
    %10 = vector.load %arg4[%c0_8, %c0_9] : memref<32x32xf32, #tpu.memory_space<vmem>>, vector<32x32xf32>
    %cst_10 = arith.constant dense<0.000000e+00> : vector<128x32xf32>
    %11 = tpu.matmul %9, %10, %cst_10 {dimension_numbers = #tpu.dot_dimension_numbers<[1], [0], [0], [1], [0, 0, 1, 1], [], []>} : vector<128x32xf32>, vector<32x32xf32>, vector<128x32xf32> -> vector<128x32xf32>
    %c0_11 = arith.constant 0 : index
    %c0_12 = arith.constant 0 : index
    %12 = vector.load %arg5[%c0_11, %c0_12] : memref<1x32xf32, #tpu.memory_space<vmem>>, vector<1x32xf32>
    %13 = vector.broadcast %12 : vector<1x32xf32> to vector<128x32xf32>
    %14 = arith.addf %11, %13 : vector<128x32xf32>
    %cst_13 = arith.constant 3.000000e+00 : f32
    %15 = vector.broadcast %cst_13 : f32 to vector<128x32xf32>
    %16 = arith.mulf %15, %14 : vector<128x32xf32>
    %17 = math.tanh %16 : vector<128x32xf32>
    %cst_14 = arith.constant dense<0.000000e+00> : vector<128x128xf32>
    %18 = tpu.matmul %8, %17, %cst_14 {dimension_numbers = #tpu.dot_dimension_numbers<[1], [1], [0], [0], [0, 0, 1, 0], [], []>} : vector<128x32xf32>, vector<128x32xf32>, vector<128x128xf32> -> vector<128x128xf32>
    %cst_15 = arith.constant dense<0.000000e+00> : vector<128x128xf32>
    %19 = tpu.matmul %17, %8, %cst_15 {dimension_numbers = #tpu.dot_dimension_numbers<[1], [1], [0], [0], [0, 0, 1, 0], [], []>} : vector<128x32xf32>, vector<128x32xf32>, vector<128x128xf32> -> vector<128x128xf32>
    %20 = arith.subf %18, %19 : vector<128x128xf32>
    %cst_16 = arith.constant 3.000000e+00 : f32
    %21 = vector.broadcast %cst_16 : f32 to vector<128x128xf32>
    %22 = arith.mulf %21, %20 : vector<128x128xf32>
    %23 = math.tanh %22 : vector<128x128xf32>
    %cst_17 = arith.constant 0.000000e+00 : f32
    %24 = vector.broadcast %cst_17 : f32 to vector<128x128xf32>
    %25 = arith.maximumf %23, %24 : vector<128x128xf32>
    %26 = tpu.iota {dimensions = array<i32: 1>} : vector<128x128xi32>
    %27 = tpu.bitcast %25 : vector<128x128xf32> -> vector<128x128xi32>
    %c-128_i32 = arith.constant -128 : i32
    %28 = vector.broadcast %c-128_i32 : i32 to vector<128x128xi32>
    %29 = arith.andi %27, %28 : vector<128x128xi32>
    %30 = arith.ori %29, %26 : vector<128x128xi32>
    %cst_18 = arith.constant dense<-2147483648> : vector<128xi32>
    %31 = vector.multi_reduction <maxsi>, %30, %cst_18 [1] : vector<128x128xi32> to vector<128xi32>
    %32 = vector.shape_cast %31 : vector<128xi32> to vector<128x1xi32>
    %c127_i32 = arith.constant 127 : i32
    %33 = vector.broadcast %c127_i32 : i32 to vector<128x1xi32>
    %34 = arith.andi %32, %33 : vector<128x1xi32>
    %c0_19 = arith.constant 0 : index
    %c0_20 = arith.constant 0 : index
    %35 = vector.load %arg7[%c0_19, %c0_20] : memref<128x3xi32, #tpu.memory_space<vmem>>, vector<128x1xi32>
    tpu.vector_store %arg7[%c0_19, %c0_20], %34 {strides = array<i32>} : memref<128x3xi32, #tpu.memory_space<vmem>>, vector<128x1xi32>,
    %c-128_i32_21 = arith.constant -128 : i32
    %36 = vector.broadcast %c-128_i32_21 : i32 to vector<128x1xi32>
    %37 = arith.andi %32, %36 : vector<128x1xi32>
    %38 = tpu.bitcast %37 : vector<128x1xi32> -> vector<128x1xf32>
    %c0_22 = arith.constant 0 : index
    %c0_23 = arith.constant 0 : index
    %39 = vector.load %arg8[%c0_22, %c0_23] : memref<128x3xf32, #tpu.memory_space<vmem>>, vector<128x1xf32>
    tpu.vector_store %arg8[%c0_22, %c0_23], %38 {strides = array<i32>} : memref<128x3xf32, #tpu.memory_space<vmem>>, vector<128x1xf32>,
    %40 = vector.broadcast %32 : vector<128x1xi32> to vector<128x128xi32>
    %41 = arith.cmpi eq, %30, %40 : vector<128x128xi32>
    %c-1_i32 = arith.constant -1 : i32
    %42 = vector.broadcast %c-1_i32 : i32 to vector<128x128xi32>
    %43 = arith.select %41, %42, %30 : vector<128x128xi1>, vector<128x128xi32>
    %cst_24 = arith.constant dense<-2147483648> : vector<128xi32>
    %44 = vector.multi_reduction <maxsi>, %43, %cst_24 [1] : vector<128x128xi32> to vector<128xi32>
    %45 = vector.shape_cast %44 : vector<128xi32> to vector<128x1xi32>
    %c127_i32_25 = arith.constant 127 : i32
    %46 = vector.broadcast %c127_i32_25 : i32 to vector<128x1xi32>
    %47 = arith.andi %45, %46 : vector<128x1xi32>
    %c0_26 = arith.constant 0 : index
    %c1 = arith.constant 1 : index
    %48 = vector.load %arg7[%c0_26, %c1] : memref<128x3xi32, #tpu.memory_space<vmem>>, vector<128x1xi32>
    tpu.vector_store %arg7[%c0_26, %c1], %47 {strides = array<i32>} : memref<128x3xi32, #tpu.memory_space<vmem>>, vector<128x1xi32>,
    %c-128_i32_27 = arith.constant -128 : i32
    %49 = vector.broadcast %c-128_i32_27 : i32 to vector<128x1xi32>
    %50 = arith.andi %45, %49 : vector<128x1xi32>
    %51 = tpu.bitcast %50 : vector<128x1xi32> -> vector<128x1xf32>
    %c0_28 = arith.constant 0 : index
    %c1_29 = arith.constant 1 : index
    %52 = vector.load %arg8[%c0_28, %c1_29] : memref<128x3xf32, #tpu.memory_space<vmem>>, vector<128x1xf32>
    tpu.vector_store %arg8[%c0_28, %c1_29], %51 {strides = array<i32>} : memref<128x3xf32, #tpu.memory_space<vmem>>, vector<128x1xf32>,
    %53 = vector.broadcast %45 : vector<128x1xi32> to vector<128x128xi32>
    %54 = arith.cmpi eq, %43, %53 : vector<128x128xi32>
    %c-1_i32_30 = arith.constant -1 : i32
    %55 = vector.broadcast %c-1_i32_30 : i32 to vector<128x128xi32>
    %56 = arith.select %54, %55, %43 : vector<128x128xi1>, vector<128x128xi32>
    %cst_31 = arith.constant dense<-2147483648> : vector<128xi32>
    %57 = vector.multi_reduction <maxsi>, %56, %cst_31 [1] : vector<128x128xi32> to vector<128xi32>
    %58 = vector.shape_cast %57 : vector<128xi32> to vector<128x1xi32>
    %c127_i32_32 = arith.constant 127 : i32
    %59 = vector.broadcast %c127_i32_32 : i32 to vector<128x1xi32>
    %60 = arith.andi %58, %59 : vector<128x1xi32>
    %c0_33 = arith.constant 0 : index
    %c2 = arith.constant 2 : index
    %61 = vector.load %arg7[%c0_33, %c2] : memref<128x3xi32, #tpu.memory_space<vmem>>, vector<128x1xi32>
    tpu.vector_store %arg7[%c0_33, %c2], %60 {strides = array<i32>} : memref<128x3xi32, #tpu.memory_space<vmem>>, vector<128x1xi32>,
    %c-128_i32_34 = arith.constant -128 : i32
    %62 = vector.broadcast %c-128_i32_34 : i32 to vector<128x1xi32>
    %63 = arith.andi %58, %62 : vector<128x1xi32>
    %64 = tpu.bitcast %63 : vector<128x1xi32> -> vector<128x1xf32>
    %c0_35 = arith.constant 0 : index
    %c2_36 = arith.constant 2 : index
    %65 = vector.load %arg8[%c0_35, %c2_36] : memref<128x3xf32, #tpu.memory_space<vmem>>, vector<128x1xf32>
    tpu.vector_store %arg8[%c0_35, %c2_36], %64 {strides = array<i32>} : memref<128x3xf32, #tpu.memory_space<vmem>>, vector<128x1xf32>,
    %66 = vector.broadcast %58 : vector<128x1xi32> to vector<128x128xi32>
    %67 = arith.cmpi eq, %56, %66 : vector<128x128xi32>
    %c-1_i32_37 = arith.constant -1 : i32
    %68 = vector.broadcast %c-1_i32_37 : i32 to vector<128x128xi32>
    %69 = arith.select %67, %68, %56 : vector<128x128xi1>, vector<128x128xi32>
    %c0_i32 = arith.constant 0 : i32
    %70 = vector.broadcast %c0_i32 : i32 to vector<128x128xi32>
    %71 = arith.cmpi slt, %69, %70 : vector<128x128xi32>
    %cst_38 = arith.constant 0.000000e+00 : f32
    %72 = vector.broadcast %cst_38 : f32 to vector<128x128xf32>
    %73 = arith.select %71, %25, %72 : vector<128x128xi1>, vector<128x128xf32>
    %c0_39 = arith.constant 0 : index
    %c0_40 = arith.constant 0 : index
    %74 = vector.load %arg6[%c0_39, %c0_40] : memref<128x128xf32, #tpu.memory_space<vmem>>, vector<128x128xf32>
    tpu.vector_store %arg6[%c0_39, %c0_40], %73 {strides = array<i32>} : memref<128x128xf32, #tpu.memory_space<vmem>>, vector<128x128xf32>,
    return
  }
}

</mosaic_0001>

<llo_original>
// kernel: tpu_custom_call.1
$region0: #{tpu_custom_call.1}
  #allocation0 [shape = 'u32[]', space=smem, size = 0x4, offset = 0x4, fixed_abs, tag = 'smem constant byte address 0x4 - core index']
  #allocation1 [shape = 'u32[144,128]{1,0:T(1,128)}', space=vmem, size = 0x12000, scoped, tag = 'internal scratch']
  %s0 = inlined_call_operand.vmem [shape: f32[128,32], index: 0, kind: input, shape index: {}]
  %s1 = inlined_call_operand.vmem [shape: f32[128,32], index: 1, kind: input, shape index: {}]
  %s2 = inlined_call_operand.vmem [shape: f32[32,32], index: 2, kind: input, shape index: {}]
  %s3 = inlined_call_operand.vmem [shape: f32[1,32], index: 3, kind: input, shape index: {}]
  %s4 = inlined_call_operand.vmem [shape: f32[32,32], index: 4, kind: input, shape index: {}]
  %s5 = inlined_call_operand.vmem [shape: f32[1,32], index: 5, kind: input, shape index: {}]
  %s6 = inlined_call_operand.hbm [shape: f32[128,128], index: 6, kind: output, shape index: {0}]
  %s7 = inlined_call_operand.vmem [shape: s32[128,3], index: 7, kind: output, shape index: {1}]
  %s8 = inlined_call_operand.vmem [shape: f32[128,3], index: 8, kind: output, shape index: {2}]
  %9 = xla_tuple %s6, %s7, %s8
  %s10 = sld [smem:[#allocation0]]
  $region50: #{tpu_custom_call.1} parent=0
    _
  %s12 = ssub.s32 1, %s10
  %s13 = scalar_select 0, %s12, %s10
  $region1: #{tpu_custom_call.1} parent=0
    #allocation2 [shape = 'u8[65536]{0}', space=vmem, size = 0x10000, scoped, tag = 'output window, operand 0, single buffered']
    #allocation3 [shape = 's32[1]{0}', space=sflag, size = 0x4, scoped, tag = 'scoped memory for tpu_custom_call.1']
    %14 = vsyncpa [#allocation3], 0
    // Predicated region
    $region2: #{tpu_custom_call.1} parent=1 // pred_check
      _
    $region3: #{tpu_custom_call.1} parent=1 // pred_check_branch
      %16 = sbr.rel (0) target = $region5
    $region4: #{tpu_custom_call.1} parent=1 // pred_region
      _
    $region5: #{tpu_custom_call.1} parent=1 // pred_fallthru
      _
    // Predicated region
    $region6: #{tpu_custom_call.1} parent=1 // pred_check
      _
    $region7: #{tpu_custom_call.1} parent=1 // pred_check_branch
      %18 = sbr.rel (0) target = $region9
    $region8: #{tpu_custom_call.1} parent=1 // pred_region
      _
    $region9: #{tpu_custom_call.1} parent=1 // pred_fallthru
      _
    // Predicated region
    $region10: #{tpu_custom_call.1} parent=1 // pred_check
      _
    $region11: #{tpu_custom_call.1} parent=1 // pred_check_branch
      %20 = sbr.rel (0) target = $region13
    $region12: #{tpu_custom_call.1} parent=1 // pred_region
      _
    $region13: #{tpu_custom_call.1} parent=1 // pred_fallthru
      _
    // Predicated region
    $region14: #{tpu_custom_call.1} parent=1 // pred_check
      _
    $region15: #{tpu_custom_call.1} parent=1 // pred_check_branch
      %22 = sbr.rel (0) target = $region17
    $region16: #{tpu_custom_call.1} parent=1 // pred_region
      _
    $region17: #{tpu_custom_call.1} parent=1 // pred_fallthru
      _
    // Predicated region
    $region18: #{tpu_custom_call.1} parent=1 // pred_check
      _
    $region19: #{tpu_custom_call.1} parent=1 // pred_check_branch
      %24 = sbr.rel (0) target = $region21
    $region20: #{tpu_custom_call.1} parent=1 // pred_region
      _
    $region21: #{tpu_custom_call.1} parent=1 // pred_fallthru
      _
    // Predicated region
    $region22: #{tpu_custom_call.1} parent=1 // pred_check
      _
    $region23: #{tpu_custom_call.1} parent=1 // pred_check_branch
      %26 = sbr.rel (0) target = $region25
    $region24: #{tpu_custom_call.1} parent=1 // pred_region
      _
    $region25: #{tpu_custom_call.1} parent=1 // pred_fallthru
      _
    %v27 = vld [vmem:[%s0] sm:$0xff]
    %v28 = vld [vmem:[%s0 + $0x8] sm:$0xff]
    %v29 = vld [vmem:[%s0 + $0x10] sm:$0xff]
    %v30 = vld [vmem:[%s0 + $0x18] sm:$0xff]
    %v31 = vld [vmem:[%s0 + $0x20] sm:$0xff]
    %v32 = vld [vmem:[%s0 + $0x28] sm:$0xff]
    %v33 = vld [vmem:[%s0 + $0x30] sm:$0xff]
    %v34 = vld [vmem:[%s0 + $0x38] sm:$0xff]
    %v35 = vld [vmem:[%s0 + $0x40] sm:$0xff]
    %v36 = vld [vmem:[%s0 + $0x48] sm:$0xff]
    %v37 = vld [vmem:[%s0 + $0x50] sm:$0xff]
    %v38 = vld [vmem:[%s0 + $0x58] sm:$0xff]
    %v39 = vld [vmem:[%s0 + $0x60] sm:$0xff]
    %v40 = vld [vmem:[%s0 + $0x68] sm:$0xff]
    %v41 = vld [vmem:[%s0 + $0x70] sm:$0xff]
    %v42 = vld [vmem:[%s0 + $0x78] sm:$0xff]
    %v43 = vld [vmem:[%s2] sm:$0xff]
    %v44 = vld [vmem:[%s2 + $0x8] sm:$0xff]
    %v45 = vld [vmem:[%s2 + $0x10] sm:$0xff]
    %v46 = vld [vmem:[%s2 + $0x18] sm:$0xff]
    %v47 = vld [vmem:[%s3] sm:$0x1]
    %v49 = vlaneseq
    %v50 = vshrl.u32 %v49, 7
    %v51 = vsub.s32 0, %v50
    %v52 = vrot.slane %v47, %v51
    %vm54 = vcmask 261120
    %v56 = vsel %vm54, %v27, 0
    %v59 = vsel %vm54, %v28, 0
    %v62 = vsel %vm54, %v29, 0
    %v65 = vsel %vm54, %v30, 0
    %v68 = vsel %vm54, %v31, 0
    %v71 = vsel %vm54, %v32, 0
    %v74 = vsel %vm54, %v33, 0
    %v77 = vsel %vm54, %v34, 0
    %v80 = vsel %vm54, %v35, 0
    %v83 = vsel %vm54, %v36, 0
    %v86 = vsel %vm54, %v37, 0
    %v89 = vsel %vm54, %v38, 0
    %v92 = vsel %vm54, %v39, 0
    %v95 = vsel %vm54, %v40, 0
    %v98 = vsel %vm54, %v41, 0
    %v101 = vsel %vm54, %v42, 0
    %103 = vmatprep.subr.mxu0 0.0
    %104 = vmatpush1.msra.mxu0 %v43
    %105 = vmatprep.subr.mxu0 0.0
    %106 = vmatpush1.msra.mxu0 %v44
    %107 = vmatprep.subr.mxu0 0.0
    %108 = vmatpush1.msra.mxu0 %v45
    %109 = vmatprep.subr.mxu0 0.0
    %110 = vmatpush1.msra.mxu0 %v46
    %111 = vmatprep.subr.mxu0 0.0
    %112 = vmatpush1.msra.mxu0 0.0
    %113 = vmatprep.subr.mxu0 0.0
    %114 = vmatpush1.msra.mxu0 0.0
    %115 = vmatprep.subr.mxu0 0.0
    %116 = vmatpush1.msra.mxu0 0.0
    %117 = vmatprep.subr.mxu0 0.0
    %118 = vmatpush1.msra.mxu0 0.0
    %119 = vmatprep.subr.mxu0 0.0
    %120 = vmatpush1.msra.mxu0 0.0
    %121 = vmatprep.subr.mxu0 0.0
    %122 = vmatpush1.msra.mxu0 0.0
    %123 = vmatprep.subr.mxu0 0.0
    %124 = vmatpush1.msra.mxu0 0.0
    %125 = vmatprep.subr.mxu0 0.0
    %126 = vmatpush1.msra.mxu0 0.0
    %127 = vmatprep.subr.mxu0 0.0
    %128 = vmatpush1.msra.mxu0 0.0
    %129 = vmatprep.subr.mxu0 0.0
    %130 = vmatpush1.msra.mxu0 0.0
    %131 = vmatprep.subr.mxu0 0.0
    %132 = vmatpush1.msra.mxu0 0.0
    %133 = vmatprep.subr.mxu0 0.0
    %134 = vmatpush1.msra.mxu0 0.0
    %135 = vmatprep.subr.mxu0 0.0
    %136 = vmatpush1.msra.mxu0 0.0
    %137 = vmatprep.subr.mxu0 0.0
    %138 = vmatpush1.msra.mxu0 0.0
    %139 = vmatprep.subr.mxu0 0.0
    %140 = vmatpush1.msra.mxu0 0.0
    %141 = vmatprep.subr.mxu0 0.0
    %142 = vmatpush1.msra.mxu0 0.0
    %143 = vmatprep.subr.mxu0 0.0
    %144 = vmatpush1.msra.mxu0 0.0
    %145 = vmatprep.subr.mxu0 0.0
    %146 = vmatpush1.msra.mxu0 0.0
    %147 = vmatprep.subr.mxu0 0.0
    %148 = vmatpush1.msra.mxu0 0.0
    %149 = vmatprep.subr.mxu0 0.0
    %150 = vmatpush1.msra.mxu0 0.0
    %151 = vmatprep.subr.mxu0 0.0
    %152 = vmatpush1.msra.mxu0 0.0
    %153 = vmatprep.subr.mxu0 0.0
    %154 = vmatpush1.msra.mxu0 0.0
    %155 = vmatprep.subr.mxu0 0.0
    %156 = vmatpush1.msra.mxu0 0.0
    %157 = vmatprep.subr.mxu0 0.0
    %158 = vmatpush1.msra.mxu0 0.0
    %159 = vmatprep.subr.mxu0 0.0
    %160 = vmatpush1.msra.mxu0 0.0
    %161 = vmatprep.subr.mxu0 0.0
    %162 = vmatpush1.msra.mxu0 0.0
    %163 = vmatprep.subr.mxu0 0.0
    %164 = vmatpush1.msra.mxu0 0.0
    %165 = vmatprep.subr.mxu0 0.0
    %166 = vmatpush1.msra.mxu0 0.0
    %167 = vmatprep.mubr.f32.mxu0 0.0
    %168 = vmatmul.mubr.f32.gmra.mrb[0].mxu0 %v56
    %v169 = vpop.f32.mrb[0].mxu0
    %v170 = vadd.f32 %v52, %v169
    %v171 = vpop.f32.mrb[0].mxu0
    %172 = vmatprep.mubr.f32.mxu0 0.0
    %173 = vmatmul.mubr.f32.gmra.mrb[0].mxu0 %v59
    %v174 = vpop.f32.mrb[0].mxu0
    %v175 = vadd.f32 %v52, %v174
    %v176 = vpop.f32.mrb[0].mxu0
    %177 = vmatprep.mubr.f32.mxu0 0.0
    %178 = vmatmul.mubr.f32.gmra.mrb[0].mxu0 %v62
    %v179 = vpop.f32.mrb[0].mxu0
    %v180 = vadd.f32 %v52, %v179
    %v181 = vpop.f32.mrb[0].mxu0
    %182 = vmatprep.mubr.f32.mxu0 0.0
    %183 = vmatmul.mubr.f32.gmra.mrb[0].mxu0 %v65
    %v184 = vpop.f32.mrb[0].mxu0
    %v185 = vadd.f32 %v52, %v184
    %v186 = vpop.f32.mrb[0].mxu0
    %187 = vmatprep.mubr.f32.mxu0 0.0
    %188 = vmatmul.mubr.f32.gmra.mrb[0].mxu0 %v68
    %v189 = vpop.f32.mrb[0].mxu0
    %v190 = vadd.f32 %v52, %v189
    %v191 = vpop.f32.mrb[0].mxu0
    %192 = vmatprep.mubr.f32.mxu0 0.0
    %193 = vmatmul.mubr.f32.gmra.mrb[0].mxu0 %v71
    %v194 = vpop.f32.mrb[0].mxu0
    %v195 = vadd.f32 %v52, %v194
    %v196 = vpop.f32.mrb[0].mxu0
    %197 = vmatprep.mubr.f32.mxu0 0.0
    %198 = vmatmul.mubr.f32.gmra.mrb[0].mxu0 %v74
    %v199 = vpop.f32.mrb[0].mxu0
    %v200 = vadd.f32 %v52, %v199
    %v201 = vpop.f32.mrb[0].mxu0
    %202 = vmatprep.mubr.f32.mxu0 0.0
    %203 = vmatmul.mubr.f32.gmra.mrb[0].mxu0 %v77
    %v204 = vpop.f32.mrb[0].mxu0
    %v205 = vadd.f32 %v52, %v204
    %v206 = vpop.f32.mrb[0].mxu0
    %207 = vmatprep.mubr.f32.mxu0 0.0
    %208 = vmatmul.mubr.f32.gmra.mrb[0].mxu0 %v80
    %v209 = vpop.f32.mrb[0].mxu0
    %v210 = vadd.f32 %v52, %v209
    %v211 = vpop.f32.mrb[0].mxu0
    %212 = vmatprep.mubr.f32.mxu0 0.0
    %213 = vmatmul.mubr.f32.gmra.mrb[0].mxu0 %v83
    %v214 = vpop.f32.mrb[0].mxu0
    %v215 = vadd.f32 %v52, %v214
    %v216 = vpop.f32.mrb[0].mxu0
    %217 = vmatprep.mubr.f32.mxu0 0.0
    %218 = vmatmul.mubr.f32.gmra.mrb[0].mxu0 %v86
    %v219 = vpop.f32.mrb[0].mxu0
    %v220 = vadd.f32 %v52, %v219
    %v221 = vpop.f32.mrb[0].mxu0
    %222 = vmatprep.mubr.f32.mxu0 0.0
    %223 = vmatmul.mubr.f32.gmra.mrb[0].mxu0 %v89
    %v224 = vpop.f32.mrb[0].mxu0
    %v225 = vadd.f32 %v52, %v224
    %v226 = vpop.f32.mrb[0].mxu0
    %227 = vmatprep.mubr.f32.mxu0 0.0
    %228 = vmatmul.mubr.f32.gmra.mrb[0].mxu0 %v92
    %v229 = vpop.f32.mrb[0].mxu0
    %v230 = vadd.f32 %v52, %v229
    %v231 = vpop.f32.mrb[0].mxu0
    %232 = vmatprep.mubr.f32.mxu0 0.0
    %233 = vmatmul.mubr.f32.gmra.mrb[0].mxu0 %v95
    %v234 = vpop.f32.mrb[0].mxu0
    %v235 = vadd.f32 %v52, %v234
    %v236 = vpop.f32.mrb[0].mxu0
    %237 = vmatprep.mubr.f32.mxu0 0.0
    %238 = vmatmul.mubr.f32.gmra.mrb[0].mxu0 %v98
    %v239 = vpop.f32.mrb[0].mxu0
    %v240 = vadd.f32 %v52, %v239
    %v241 = vpop.f32.mrb[0].mxu0
    %242 = vmatprep.mubr.f32.mxu0 0.0
    %243 = vmatmul.mubr.f32.gmra.mrb[0].mxu0 %v101
    %v244 = vpop.f32.mrb[0].mxu0
    %v245 = vadd.f32 %v52, %v244
    %v246 = vpop.f32.mrb[0].mxu0
    %247 = vdwg.mxu0
    %v248 = vmul.f32 %v170, 3.0
    %v249 = vmul.f32 %v175, 3.0
    %v250 = vmul.f32 %v180, 3.0
    %v251 = vmul.f32 %v185, 3.0
    %v252 = vmul.f32 %v190, 3.0
    %v253 = vmul.f32 %v195, 3.0
    %v254 = vmul.f32 %v200, 3.0
    %v255 = vmul.f32 %v205, 3.0
    %v256 = vmul.f32 %v210, 3.0
    %v257 = vmul.f32 %v215, 3.0
    %v258 = vmul.f32 %v220, 3.0
    %v259 = vmul.f32 %v225, 3.0
    %v260 = vmul.f32 %v230, 3.0
    %v261 = vmul.f32 %v235, 3.0
    %v262 = vmul.f32 %v240, 3.0
    %v263 = vmul.f32 %v245, 3.0
    %v264 = vtanh.pop %v248
    %v265 = vtanh.pop %v249
    %v266 = vtanh.pop %v250
    %v267 = vtanh.pop %v251
    %v268 = vtanh.pop %v252
    %v269 = vtanh.pop %v253
    %v270 = vtanh.pop %v254
    %v271 = vtanh.pop %v255
    %v272 = vtanh.pop %v256
    %v273 = vtanh.pop %v257
    %v274 = vtanh.pop %v258
    %v275 = vtanh.pop %v259
    %v276 = vtanh.pop %v260
    %v277 = vtanh.pop %v261
    %v278 = vtanh.pop %v262
    %v279 = vtanh.pop %v263
    %v280 = vld [vmem:[%s1] sm:$0xff]
    %v281 = vld [vmem:[%s1 + $0x8] sm:$0xff]
    %v282 = vld [vmem:[%s1 + $0x10] sm:$0xff]
    %v283 = vld [vmem:[%s1 + $0x18] sm:$0xff]
    %v284 = vld [vmem:[%s1 + $0x20] sm:$0xff]
    %v285 = vld [vmem:[%s1 + $0x28] sm:$0xff]
    %v286 = vld [vmem:[%s1 + $0x30] sm:$0xff]
    %v287 = vld [vmem:[%s1 + $0x38] sm:$0xff]
    %v288 = vld [vmem:[%s1 + $0x40] sm:$0xff]
    %v289 = vld [vmem:[%s1 + $0x48] sm:$0xff]
    %v290 = vld [vmem:[%s1 + $0x50] sm:$0xff]
    %v291 = vld [vmem:[%s1 + $0x58] sm:$0xff]
    %v292 = vld [vmem:[%s1 + $0x60] sm:$0xff]
    %v293 = vld [vmem:[%s1 + $0x68] sm:$0xff]
    %v294 = vld [vmem:[%s1 + $0x70] sm:$0xff]
    %v295 = vld [vmem:[%s1 + $0x78] sm:$0xff]
    %v296 = vld [vmem:[%s4] sm:$0xff]
    %v297 = vld [vmem:[%s4 + $0x8] sm:$0xff]
    %v298 = vld [vmem:[%s4 + $0x10] sm:$0xff]
    %v299 = vld [vmem:[%s4 + $0x18] sm:$0xff]
    %v300 = vld [vmem:[%s5] sm:$0x1]
    %v302 = vlaneseq
    %v303 = vshrl.u32 %v302, 7
    %v304 = vsub.s32 0, %v303
    %v305 = vrot.slane %v300, %v304
    %v308 = vsel %vm54, %v280, 0
    %v311 = vsel %vm54, %v281, 0
    %v314 = vsel %vm54, %v282, 0
    %v317 = vsel %vm54, %v283, 0
    %v320 = vsel %vm54, %v284, 0
    %v323 = vsel %vm54, %v285, 0
    %v326 = vsel %vm54, %v286, 0
    %v329 = vsel %vm54, %v287, 0
    %v332 = vsel %vm54, %v288, 0
    %v335 = vsel %vm54, %v289, 0
    %v338 = vsel %vm54, %v290, 0
    %v341 = vsel %vm54, %v291, 0
    %v344 = vsel %vm54, %v292, 0
    %v347 = vsel %vm54, %v293, 0
    %v350 = vsel %vm54, %v294, 0
    %v353 = vsel %vm54, %v295, 0
    %355 = vmatprep.subr.mxu0 0.0
    %356 = vmatpush1.msra.mxu0 %v296
    %357 = vmatprep.subr.mxu0 0.0
    %358 = vmatpush1.msra.mxu0 %v297
    %359 = vmatprep.subr.mxu0 0.0
    %360 = vmatpush1.msra.mxu0 %v298
    %361 = vmatprep.subr.mxu0 0.0
    %362 = vmatpush1.msra.mxu0 %v299
    %363 = vmatprep.subr.mxu0 0.0
    %364 = vmatpush1.msra.mxu0 0.0
    %365 = vmatprep.subr.mxu0 0.0
    %366 = vmatpush1.msra.mxu0 0.0
    %367 = vmatprep.subr.mxu0 0.0
    %368 = vmatpush1.msra.mxu0 0.0
    %369 = vmatprep.subr.mxu0 0.0
    %370 = vmatpush1.msra.mxu0 0.0
    %371 = vmatprep.subr.mxu0 0.0
    %372 = vmatpush1.msra.mxu0 0.0
    %373 = vmatprep.subr.mxu0 0.0
    %374 = vmatpush1.msra.mxu0 0.0
    %375 = vmatprep.subr.mxu0 0.0
    %376 = vmatpush1.msra.mxu0 0.0
    %377 = vmatprep.subr.mxu0 0.0
    %378 = vmatpush1.msra.mxu0 0.0
    %379 = vmatprep.subr.mxu0 0.0
    %380 = vmatpush1.msra.mxu0 0.0
    %381 = vmatprep.subr.mxu0 0.0
    %382 = vmatpush1.msra.mxu0 0.0
    %383 = vmatprep.subr.mxu0 0.0
    %384 = vmatpush1.msra.mxu0 0.0
    %385 = vmatprep.subr.mxu0 0.0
    %386 = vmatpush1.msra.mxu0 0.0
    %387 = vmatprep.subr.mxu0 0.0
    %388 = vmatpush1.msra.mxu0 0.0
    %389 = vmatprep.subr.mxu0 0.0
    %390 = vmatpush1.msra.mxu0 0.0
    %391 = vmatprep.subr.mxu0 0.0
    %392 = vmatpush1.msra.mxu0 0.0
    %393 = vmatprep.subr.mxu0 0.0
    %394 = vmatpush1.msra.mxu0 0.0
    %395 = vmatprep.subr.mxu0 0.0
    %396 = vmatpush1.msra.mxu0 0.0
    %397 = vmatprep.subr.mxu0 0.0
    %398 = vmatpush1.msra.mxu0 0.0
    %399 = vmatprep.subr.mxu0 0.0
    %400 = vmatpush1.msra.mxu0 0.0
    %401 = vmatprep.subr.mxu0 0.0
    %402 = vmatpush1.msra.mxu0 0.0
    %403 = vmatprep.subr.mxu0 0.0
    %404 = vmatpush1.msra.mxu0 0.0
    %405 = vmatprep.subr.mxu0 0.0
    %406 = vmatpush1.msra.mxu0 0.0
    %407 = vmatprep.subr.mxu0 0.0
    %408 = vmatpush1.msra.mxu0 0.0
    %409 = vmatprep.subr.mxu0 0.0
    %410 = vmatpush1.msra.mxu0 0.0
    %411 = vmatprep.subr.mxu0 0.0
    %412 = vmatpush1.msra.mxu0 0.0
    %413 = vmatprep.subr.mxu0 0.0
    %414 = vmatpush1.msra.mxu0 0.0
    %415 = vmatprep.subr.mxu0 0.0
    %416 = vmatpush1.msra.mxu0 0.0
    %417 = vmatprep.subr.mxu0 0.0
    %418 = vmatpush1.msra.mxu0 0.0
    %419 = vmatprep.mubr.f32.mxu0 0.0
    %420 = vmatmul.mubr.f32.gmra.mrb[0].mxu0 %v308
    %v421 = vpop.f32.mrb[0].mxu0
    %v422 = vadd.f32 %v305, %v421
    %v423 = vpop.f32.mrb[0].mxu0
    %424 = vmatprep.mubr.f32.mxu0 0.0
    %425 = vmatmul.mubr.f32.gmra.mrb[0].mxu0 %v311
    %v426 = vpop.f32.mrb[0].mxu0
    %v427 = vadd.f32 %v305, %v426
    %v428 = vpop.f32.mrb[0].mxu0
    %429 = vmatprep.mubr.f32.mxu0 0.0
    %430 = vmatmul.mubr.f32.gmra.mrb[0].mxu0 %v314
    %v431 = vpop.f32.mrb[0].mxu0
    %v432 = vadd.f32 %v305, %v431
    %v433 = vpop.f32.mrb[0].mxu0
    %434 = vmatprep.mubr.f32.mxu0 0.0
    %435 = vmatmul.mubr.f32.gmra.mrb[0].mxu0 %v317
    %v436 = vpop.f32.mrb[0].mxu0
    %v437 = vadd.f32 %v305, %v436
    %v438 = vpop.f32.mrb[0].mxu0
    %439 = vmatprep.mubr.f32.mxu0 0.0
    %440 = vmatmul.mubr.f32.gmra.mrb[0].mxu0 %v320
    %v441 = vpop.f32.mrb[0].mxu0
    %v442 = vadd.f32 %v305, %v441
    %v443 = vpop.f32.mrb[0].mxu0
    %444 = vmatprep.mubr.f32.mxu0 0.0
    %445 = vmatmul.mubr.f32.gmra.mrb[0].mxu0 %v323
    %v446 = vpop.f32.mrb[0].mxu0
    %v447 = vadd.f32 %v305, %v446
    %v448 = vpop.f32.mrb[0].mxu0
    %449 = vmatprep.mubr.f32.mxu0 0.0
    %450 = vmatmul.mubr.f32.gmra.mrb[0].mxu0 %v326
    %v451 = vpop.f32.mrb[0].mxu0
    %v452 = vadd.f32 %v305, %v451
    %v453 = vpop.f32.mrb[0].mxu0
    %454 = vmatprep.mubr.f32.mxu0 0.0
    %455 = vmatmul.mubr.f32.gmra.mrb[0].mxu0 %v329
    %v456 = vpop.f32.mrb[0].mxu0
    %v457 = vadd.f32 %v305, %v456
    %v458 = vpop.f32.mrb[0].mxu0
    %459 = vmatprep.mubr.f32.mxu0 0.0
    %460 = vmatmul.mubr.f32.gmra.mrb[0].mxu0 %v332
    %v461 = vpop.f32.mrb[0].mxu0
    %v462 = vadd.f32 %v305, %v461
    %v463 = vpop.f32.mrb[0].mxu0
    %464 = vmatprep.mubr.f32.mxu0 0.0
    %465 = vmatmul.mubr.f32.gmra.mrb[0].mxu0 %v335
    %v466 = vpop.f32.mrb[0].mxu0
    %v467 = vadd.f32 %v305, %v466
    %v468 = vpop.f32.mrb[0].mxu0
    %469 = vmatprep.mubr.f32.mxu0 0.0
    %470 = vmatmul.mubr.f32.gmra.mrb[0].mxu0 %v338
    %v471 = vpop.f32.mrb[0].mxu0
    %v472 = vadd.f32 %v305, %v471
    %v473 = vpop.f32.mrb[0].mxu0
    %474 = vmatprep.mubr.f32.mxu0 0.0
    %475 = vmatmul.mubr.f32.gmra.mrb[0].mxu0 %v341
    %v476 = vpop.f32.mrb[0].mxu0
    %v477 = vadd.f32 %v305, %v476
    %v478 = vpop.f32.mrb[0].mxu0
    %479 = vmatprep.mubr.f32.mxu0 0.0
    %480 = vmatmul.mubr.f32.gmra.mrb[0].mxu0 %v344
    %v481 = vpop.f32.mrb[0].mxu0
    %v482 = vadd.f32 %v305, %v481
    %v483 = vpop.f32.mrb[0].mxu0
    %484 = vmatprep.mubr.f32.mxu0 0.0
    %485 = vmatmul.mubr.f32.gmra.mrb[0].mxu0 %v347
    %v486 = vpop.f32.mrb[0].mxu0
    %v487 = vadd.f32 %v305, %v486
    %v488 = vpop.f32.mrb[0].mxu0
    %489 = vmatprep.mubr.f32.mxu0 0.0
    %490 = vmatmul.mubr.f32.gmra.mrb[0].mxu0 %v350
    %v491 = vpop.f32.mrb[0].mxu0
    %v492 = vadd.f32 %v305, %v491
    %v493 = vpop.f32.mrb[0].mxu0
    %494 = vmatprep.mubr.f32.mxu0 0.0
    %495 = vmatmul.mubr.f32.gmra.mrb[0].mxu0 %v353
    %v496 = vpop.f32.mrb[0].mxu0
    %v497 = vadd.f32 %v305, %v496
    %v498 = vpop.f32.mrb[0].mxu0
    %499 = vdwg.mxu0
    %v500 = vmul.f32 %v422, 3.0
    %v501 = vmul.f32 %v427, 3.0
    %v502 = vmul.f32 %v432, 3.0
    %v503 = vmul.f32 %v437, 3.0
    %v504 = vmul.f32 %v442, 3.0
    %v505 = vmul.f32 %v447, 3.0
    %v506 = vmul.f32 %v452, 3.0
    %v507 = vmul.f32 %v457, 3.0
    %v508 = vmul.f32 %v462, 3.0
    %v509 = vmul.f32 %v467, 3.0
    %v510 = vmul.f32 %v472, 3.0
    %v511 = vmul.f32 %v477, 3.0
    %v512 = vmul.f32 %v482, 3.0
    %v513 = vmul.f32 %v487, 3.0
    %v514 = vmul.f32 %v492, 3.0
    %v515 = vmul.f32 %v497, 3.0
    %v516 = vtanh.pop %v500
    %v517 = vtanh.pop %v501
    %v518 = vtanh.pop %v502
    %v519 = vtanh.pop %v503
    %v520 = vtanh.pop %v504
    %v521 = vtanh.pop %v505
    %v522 = vtanh.pop %v506
    %v523 = vtanh.pop %v507
    %v524 = vtanh.pop %v508
    %v525 = vtanh.pop %v509
    %v526 = vtanh.pop %v510
    %v527 = vtanh.pop %v511
    %v528 = vtanh.pop %v512
    %v529 = vtanh.pop %v513
    %v530 = vtanh.pop %v514
    %v531 = vtanh.pop %v515
    %v533 = vsel %vm54, %v264, 0
    %v536 = vsel %vm54, %v265, 0
    %v539 = vsel %vm54, %v266, 0
    %v542 = vsel %vm54, %v267, 0
    %v545 = vsel %vm54, %v268, 0
    %v548 = vsel %vm54, %v269, 0
    %v551 = vsel %vm54, %v270, 0
    %v554 = vsel %vm54, %v271, 0
    %v557 = vsel %vm54, %v272, 0
    %v560 = vsel %vm54, %v273, 0
    %v563 = vsel %vm54, %v274, 0
    %v566 = vsel %vm54, %v275, 0
    %v569 = vsel %vm54, %v276, 0
    %v572 = vsel %vm54, %v277, 0
    %v575 = vsel %vm54, %v278, 0
    %v578 = vsel %vm54, %v279, 0
    %v581 = vsel %vm54, %v516, 0
    %v584 = vsel %vm54, %v517, 0
    %v587 = vsel %vm54, %v518, 0
    %v590 = vsel %vm54, %v519, 0
    %v593 = vsel %vm54, %v520, 0
    %v596 = vsel %vm54, %v521, 0
    %v599 = vsel %vm54, %v522, 0
    %v602 = vsel %vm54, %v523, 0
    %v605 = vsel %vm54, %v524, 0
    %v608 = vsel %vm54, %v525, 0
    %v611 = vsel %vm54, %v526, 0
    %v614 = vsel %vm54, %v527, 0
    %v617 = vsel %vm54, %v528, 0
    %v620 = vsel %vm54, %v529, 0
    %v623 = vsel %vm54, %v530, 0
    %v626 = vsel %vm54, %v531, 0
    %628 = vmatprep.subr.mxu0 0.0
    %629 = vmatpush1.xpose.msra.mxu0 %v581
    %630 = vmatprep.subr.mxu0 0.0
    %631 = vmatpush1.xpose.msra.mxu0 %v584
    %632 = vmatprep.subr.mxu0 0.0
    %633 = vmatpush1.xpose.msra.mxu0 %v587
    %634 = vmatprep.subr.mxu0 0.0
    %635 = vmatpush1.xpose.msra.mxu0 %v590
    %636 = vmatprep.subr.mxu0 0.0
    %637 = vmatpush1.xpose.msra.mxu0 %v593
    %638 = vmatprep.subr.mxu0 0.0
    %639 = vmatpush1.xpose.msra.mxu0 %v596
    %640 = vmatprep.subr.mxu0 0.0
    %641 = vmatpush1.xpose.msra.mxu0 %v599
    %642 = vmatprep.subr.mxu0 0.0
    %643 = vmatpush1.xpose.msra.mxu0 %v602
    %644 = vmatprep.subr.mxu0 0.0
    %645 = vmatpush1.xpose.msra.mxu0 %v605
    %646 = vmatprep.subr.mxu0 0.0
    %647 = vmatpush1.xpose.msra.mxu0 %v608
    %648 = vmatprep.subr.mxu0 0.0
    %649 = vmatpush1.xpose.msra.mxu0 %v611
    %650 = vmatprep.subr.mxu0 0.0
    %651 = vmatpush1.xpose.msra.mxu0 %v614
    %652 = vmatprep.subr.mxu0 0.0
    %653 = vmatpush1.xpose.msra.mxu0 %v617
    %654 = vmatprep.subr.mxu0 0.0
    %655 = vmatpush1.xpose.msra.mxu0 %v620
    %656 = vmatprep.subr.mxu0 0.0
    %657 = vmatpush1.xpose.msra.mxu0 %v623
    %658 = vmatprep.subr.mxu0 0.0
    %659 = vmatpush1.xpose.msra.mxu0 %v626
    %660 = vmatprep.subr.mxu0 0.0
    %661 = vmatpush1.xpose.msra.mxu0 0.0
    %662 = vmatprep.subr.mxu0 0.0
    %663 = vmatpush1.xpose.msra.mxu0 0.0
    %664 = vmatprep.subr.mxu0 0.0
    %665 = vmatpush1.xpose.msra.mxu0 0.0
    %666 = vmatprep.subr.mxu0 0.0
    %667 = vmatpush1.xpose.msra.mxu0 0.0
    %668 = vmatprep.subr.mxu0 0.0
    %669 = vmatpush1.xpose.msra.mxu0 0.0
    %670 = vmatprep.subr.mxu0 0.0
    %671 = vmatpush1.xpose.msra.mxu0 0.0
    %672 = vmatprep.subr.mxu0 0.0
    %673 = vmatpush1.xpose.msra.mxu0 0.0
    %674 = vmatprep.subr.mxu0 0.0
    %675 = vmatpush1.xpose.msra.mxu0 0.0
    %676 = vmatprep.subr.mxu0 0.0
    %677 = vmatpush1.xpose.msra.mxu0 0.0
    %678 = vmatprep.subr.mxu0 0.0
    %679 = vmatpush1.xpose.msra.mxu0 0.0
    %680 = vmatprep.subr.mxu0 0.0
    %681 = vmatpush1.xpose.msra.mxu0 0.0
    %682 = vmatprep.subr.mxu0 0.0
    %683 = vmatpush1.xpose.msra.mxu0 0.0
    %684 = vmatprep.subr.mxu0 0.0
    %685 = vmatpush1.xpose.msra.mxu0 0.0
    %686 = vmatprep.subr.mxu0 0.0
    %687 = vmatpush1.xpose.msra.mxu0 0.0
    %688 = vmatprep.subr.mxu0 0.0
    %689 = vmatpush1.xpose.msra.mxu0 0.0
    %690 = vmatprep.subr.mxu0 0.0
    %691 = vmatpush1.xpose.msra.mxu0 0.0
    %692 = vmatprep.mubr.f32.mxu0 0.0
    %693 = vmatmul.mubr.f32.gmra.mrb[0].mxu0 %v533
    %v694 = vpop.f32.mrb[0].mxu0
    %v695 = vadd.f32 0.0, %v694
    %v696 = vpop.f32.mrb[0].mxu0
    %697 = vmatprep.mubr.f32.mxu0 0.0
    %698 = vmatmul.mubr.f32.gmra.mrb[0].mxu0 %v536
    %v699 = vpop.f32.mrb[0].mxu0
    %v700 = vadd.f32 0.0, %v699
    %v701 = vpop.f32.mrb[0].mxu0
    %702 = vmatprep.mubr.f32.mxu0 0.0
    %703 = vmatmul.mubr.f32.gmra.mrb[0].mxu0 %v539
    %v704 = vpop.f32.mrb[0].mxu0
    %v705 = vadd.f32 0.0, %v704
    %v706 = vpop.f32.mrb[0].mxu0
    %707 = vmatprep.mubr.f32.mxu0 0.0
    %708 = vmatmul.mubr.f32.gmra.mrb[0].mxu0 %v542
    %v709 = vpop.f32.mrb[0].mxu0
    %v710 = vadd.f32 0.0, %v709
    %v711 = vpop.f32.mrb[0].mxu0
    %712 = vmatprep.mubr.f32.mxu0 0.0
    %713 = vmatmul.mubr.f32.gmra.mrb[0].mxu0 %v545
    %v714 = vpop.f32.mrb[0].mxu0
    %v715 = vadd.f32 0.0, %v714
    %v716 = vpop.f32.mrb[0].mxu0
    %717 = vmatprep.mubr.f32.mxu0 0.0
    %718 = vmatmul.mubr.f32.gmra.mrb[0].mxu0 %v548
    %v719 = vpop.f32.mrb[0].mxu0
    %v720 = vadd.f32 0.0, %v719
    %v721 = vpop.f32.mrb[0].mxu0
    %722 = vmatprep.mubr.f32.mxu0 0.0
    %723 = vmatmul.mubr.f32.gmra.mrb[0].mxu0 %v551
    %v724 = vpop.f32.mrb[0].mxu0
    %v725 = vadd.f32 0.0, %v724
    %v726 = vpop.f32.mrb[0].mxu0
    %727 = vmatprep.mubr.f32.mxu0 0.0
    %728 = vmatmul.mubr.f32.gmra.mrb[0].mxu0 %v554
    %v729 = vpop.f32.mrb[0].mxu0
    %v730 = vadd.f32 0.0, %v729
    %v731 = vpop.f32.mrb[0].mxu0
    %732 = vmatprep.mubr.f32.mxu0 0.0
    %733 = vmatmul.mubr.f32.gmra.mrb[0].mxu0 %v557
    %v734 = vpop.f32.mrb[0].mxu0
    %v735 = vadd.f32 0.0, %v734
    %v736 = vpop.f32.mrb[0].mxu0
    %737 = vmatprep.mubr.f32.mxu0 0.0
    %738 = vmatmul.mubr.f32.gmra.mrb[0].mxu0 %v560
    %v739 = vpop.f32.mrb[0].mxu0
    %v740 = vadd.f32 0.0, %v739
    %v741 = vpop.f32.mrb[0].mxu0
    %742 = vmatprep.mubr.f32.mxu0 0.0
    %743 = vmatmul.mubr.f32.gmra.mrb[0].mxu0 %v563
    %v744 = vpop.f32.mrb[0].mxu0
    %v745 = vadd.f32 0.0, %v744
    %v746 = vpop.f32.mrb[0].mxu0
    %747 = vmatprep.mubr.f32.mxu0 0.0
    %748 = vmatmul.mubr.f32.gmra.mrb[0].mxu0 %v566
    %v749 = vpop.f32.mrb[0].mxu0
    %v750 = vadd.f32 0.0, %v749
    %v751 = vpop.f32.mrb[0].mxu0
    %752 = vmatprep.mubr.f32.mxu0 0.0
    %753 = vmatmul.mubr.f32.gmra.mrb[0].mxu0 %v569
    %v754 = vpop.f32.mrb[0].mxu0
    %v755 = vadd.f32 0.0, %v754
    %v756 = vpop.f32.mrb[0].mxu0
    %757 = vmatprep.mubr.f32.mxu0 0.0
    %758 = vmatmul.mubr.f32.gmra.mrb[0].mxu0 %v572
    %v759 = vpop.f32.mrb[0].mxu0
    %v760 = vadd.f32 0.0, %v759
    %v761 = vpop.f32.mrb[0].mxu0
    %762 = vmatprep.mubr.f32.mxu0 0.0
    %763 = vmatmul.mubr.f32.gmra.mrb[0].mxu0 %v575
    %v764 = vpop.f32.mrb[0].mxu0
    %v765 = vadd.f32 0.0, %v764
    %v766 = vpop.f32.mrb[0].mxu0
    %767 = vmatprep.mubr.f32.mxu0 0.0
    %768 = vmatmul.mubr.f32.gmra.mrb[0].mxu0 %v578
    %v769 = vpop.f32.mrb[0].mxu0
    %v770 = vadd.f32 0.0, %v769
    %v771 = vpop.f32.mrb[0].mxu0
    %772 = vdwg.mxu0
    %773 = vmatprep.subr.mxu0 0.0
    %774 = vmatpush1.xpose.msra.mxu0 %v533
    %775 = vmatprep.subr.mxu0 0.0
    %776 = vmatpush1.xpose.msra.mxu0 %v536
    %777 = vmatprep.subr.mxu0 0.0
    %778 = vmatpush1.xpose.msra.mxu0 %v539
    %779 = vmatprep.subr.mxu0 0.0
    %780 = vmatpush1.xpose.msra.mxu0 %v542
    %781 = vmatprep.subr.mxu0 0.0
    %782 = vmatpush1.xpose.msra.mxu0 %v545
    %783 = vmatprep.subr.mxu0 0.0
    %784 = vmatpush1.xpose.msra.mxu0 %v548
    %785 = vmatprep.subr.mxu0 0.0
    %786 = vmatpush1.xpose.msra.mxu0 %v551
    %787 = vmatprep.subr.mxu0 0.0
    %788 = vmatpush1.xpose.msra.mxu0 %v554
    %789 = vmatprep.subr.mxu0 0.0
    %790 = vmatpush1.xpose.msra.mxu0 %v557
    %791 = vmatprep.subr.mxu0 0.0
    %792 = vmatpush1.xpose.msra.mxu0 %v560
    %793 = vmatprep.subr.mxu0 0.0
    %794 = vmatpush1.xpose.msra.mxu0 %v563
    %795 = vmatprep.subr.mxu0 0.0
    %796 = vmatpush1.xpose.msra.mxu0 %v566
    %797 = vmatprep.subr.mxu0 0.0
    %798 = vmatpush1.xpose.msra.mxu0 %v569
    %799 = vmatprep.subr.mxu0 0.0
    %800 = vmatpush1.xpose.msra.mxu0 %v572
    %801 = vmatprep.subr.mxu0 0.0
    %802 = vmatpush1.xpose.msra.mxu0 %v575
    %803 = vmatprep.subr.mxu0 0.0
    %804 = vmatpush1.xpose.msra.mxu0 %v578
    %805 = vmatprep.subr.mxu0 0.0
    %806 = vmatpush1.xpose.msra.mxu0 0.0
    %807 = vmatprep.subr.mxu0 0.0
    %808 = vmatpush1.xpose.msra.mxu0 0.0
    %809 = vmatprep.subr.mxu0 0.0
    %810 = vmatpush1.xpose.msra.mxu0 0.0
    %811 = vmatprep.subr.mxu0 0.0
    %812 = vmatpush1.xpose.msra.mxu0 0.0
    %813 = vmatprep.subr.mxu0 0.0
    %814 = vmatpush1.xpose.msra.mxu0 0.0
    %815 = vmatprep.subr.mxu0 0.0
    %816 = vmatpush1.xpose.msra.mxu0 0.0
    %817 = vmatprep.subr.mxu0 0.0
    %818 = vmatpush1.xpose.msra.mxu0 0.0
    %819 = vmatprep.subr.mxu0 0.0
    %820 = vmatpush1.xpose.msra.mxu0 0.0
    %821 = vmatprep.subr.mxu0 0.0
    %822 = vmatpush1.xpose.msra.mxu0 0.0
    %823 = vmatprep.subr.mxu0 0.0
    %824 = vmatpush1.xpose.msra.mxu0 0.0
    %825 = vmatprep.subr.mxu0 0.0
    %826 = vmatpush1.xpose.msra.mxu0 0.0
    %827 = vmatprep.subr.mxu0 0.0
    %828 = vmatpush1.xpose.msra.mxu0 0.0
    %829 = vmatprep.subr.mxu0 0.0
    %830 = vmatpush1.xpose.msra.mxu0 0.0
    %831 = vmatprep.subr.mxu0 0.0
    %832 = vmatpush1.xpose.msra.mxu0 0.0
    %833 = vmatprep.subr.mxu0 0.0
    %834 = vmatpush1.xpose.msra.mxu0 0.0
    %835 = vmatprep.subr.mxu0 0.0
    %836 = vmatpush1.xpose.msra.mxu0 0.0
    %837 = vmatprep.mubr.f32.mxu0 0.0
    %838 = vmatmul.mubr.f32.gmra.mrb[0].mxu0 %v581
    %v839 = vpop.f32.mrb[0].mxu0
    %v840 = vadd.f32 0.0, %v839
    %v841 = vpop.f32.mrb[0].mxu0
    %842 = vmatprep.mubr.f32.mxu0 0.0
    %843 = vmatmul.mubr.f32.gmra.mrb[0].mxu0 %v584
    %v844 = vpop.f32.mrb[0].mxu0
    %v845 = vadd.f32 0.0, %v844
    %v846 = vpop.f32.mrb[0].mxu0
    %847 = vmatprep.mubr.f32.mxu0 0.0
    %848 = vmatmul.mubr.f32.gmra.mrb[0].mxu0 %v587
    %v849 = vpop.f32.mrb[0].mxu0
    %v850 = vadd.f32 0.0, %v849
    %v851 = vpop.f32.mrb[0].mxu0
    %852 = vmatprep.mubr.f32.mxu0 0.0
    %853 = vmatmul.mubr.f32.gmra.mrb[0].mxu0 %v590
    %v854 = vpop.f32.mrb[0].mxu0
    %v855 = vadd.f32 0.0, %v854
    %v856 = vpop.f32.mrb[0].mxu0
    %857 = vmatprep.mubr.f32.mxu0 0.0
    %858 = vmatmul.mubr.f32.gmra.mrb[0].mxu0 %v593
    %v859 = vpop.f32.mrb[0].mxu0
    %v860 = vadd.f32 0.0, %v859
    %v861 = vpop.f32.mrb[0].mxu0
    %862 = vmatprep.mubr.f32.mxu0 0.0
    %863 = vmatmul.mubr.f32.gmra.mrb[0].mxu0 %v596
    %v864 = vpop.f32.mrb[0].mxu0
    %v865 = vadd.f32 0.0, %v864
    %v866 = vpop.f32.mrb[0].mxu0
    %867 = vmatprep.mubr.f32.mxu0 0.0
    %868 = vmatmul.mubr.f32.gmra.mrb[0].mxu0 %v599
    %v869 = vpop.f32.mrb[0].mxu0
    %v870 = vadd.f32 0.0, %v869
    %v871 = vpop.f32.mrb[0].mxu0
    %872 = vmatprep.mubr.f32.mxu0 0.0
    %873 = vmatmul.mubr.f32.gmra.mrb[0].mxu0 %v602
    %v874 = vpop.f32.mrb[0].mxu0
    %v875 = vadd.f32 0.0, %v874
    %v876 = vpop.f32.mrb[0].mxu0
    %877 = vmatprep.mubr.f32.mxu0 0.0
    %878 = vmatmul.mubr.f32.gmra.mrb[0].mxu0 %v605
    %v879 = vpop.f32.mrb[0].mxu0
    %v880 = vadd.f32 0.0, %v879
    %v881 = vpop.f32.mrb[0].mxu0
    %882 = vmatprep.mubr.f32.mxu0 0.0
    %883 = vmatmul.mubr.f32.gmra.mrb[0].mxu0 %v608
    %v884 = vpop.f32.mrb[0].mxu0
    %v885 = vadd.f32 0.0, %v884
    %v886 = vpop.f32.mrb[0].mxu0
    %887 = vmatprep.mubr.f32.mxu0 0.0
    %888 = vmatmul.mubr.f32.gmra.mrb[0].mxu0 %v611
    %v889 = vpop.f32.mrb[0].mxu0
    %v890 = vadd.f32 0.0, %v889
    %v891 = vpop.f32.mrb[0].mxu0
    %892 = vmatprep.mubr.f32.mxu0 0.0
    %893 = vmatmul.mubr.f32.gmra.mrb[0].mxu0 %v614
    %v894 = vpop.f32.mrb[0].mxu0
    %v895 = vadd.f32 0.0, %v894
    %v896 = vpop.f32.mrb[0].mxu0
    %897 = vmatprep.mubr.f32.mxu0 0.0
    %898 = vmatmul.mubr.f32.gmra.mrb[0].mxu0 %v617
    %v899 = vpop.f32.mrb[0].mxu0
    %v900 = vadd.f32 0.0, %v899
    %v901 = vpop.f32.mrb[0].mxu0
    %902 = vmatprep.mubr.f32.mxu0 0.0
    %903 = vmatmul.mubr.f32.gmra.mrb[0].mxu0 %v620
    %v904 = vpop.f32.mrb[0].mxu0
    %v905 = vadd.f32 0.0, %v904
    %v906 = vpop.f32.mrb[0].mxu0
    %907 = vmatprep.mubr.f32.mxu0 0.0
    %908 = vmatmul.mubr.f32.gmra.mrb[0].mxu0 %v623
    %v909 = vpop.f32.mrb[0].mxu0
    %v910 = vadd.f32 0.0, %v909
    %v911 = vpop.f32.mrb[0].mxu0
    %912 = vmatprep.mubr.f32.mxu0 0.0
    %913 = vmatmul.mubr.f32.gmra.mrb[0].mxu0 %v626
    %v914 = vpop.f32.mrb[0].mxu0
    %v915 = vadd.f32 0.0, %v914
    %v916 = vpop.f32.mrb[0].mxu0
    %917 = vdwg.mxu0
    %v918 = vsub.f32 %v695, %v840
    %v919 = vsub.f32 %v700, %v845
    %v920 = vsub.f32 %v705, %v850
    %v921 = vsub.f32 %v710, %v855
    %v922 = vsub.f32 %v715, %v860
    %v923 = vsub.f32 %v720, %v865
    %v924 = vsub.f32 %v725, %v870
    %v925 = vsub.f32 %v730, %v875
    %v926 = vsub.f32 %v735, %v880
    %v927 = vsub.f32 %v740, %v885
    %v928 = vsub.f32 %v745, %v890
    %v929 = vsub.f32 %v750, %v895
    %v930 = vsub.f32 %v755, %v900
    %v931 = vsub.f32 %v760, %v905
    %v932 = vsub.f32 %v765, %v910
    %v933 = vsub.f32 %v770, %v915
    %v934 = vmul.f32 %v918, 3.0
    %v935 = vmul.f32 %v919, 3.0
    %v936 = vmul.f32 %v920, 3.0
    %v937 = vmul.f32 %v921, 3.0
    %v938 = vmul.f32 %v922, 3.0
    %v939 = vmul.f32 %v923, 3.0
    %v940 = vmul.f32 %v924, 3.0
    %v941 = vmul.f32 %v925, 3.0
    %v942 = vmul.f32 %v926, 3.0
    %v943 = vmul.f32 %v927, 3.0
    %v944 = vmul.f32 %v928, 3.0
    %v945 = vmul.f32 %v929, 3.0
    %v946 = vmul.f32 %v930, 3.0
    %v947 = vmul.f32 %v931, 3.0
    %v948 = vmul.f32 %v932, 3.0
    %v949 = vmul.f32 %v933, 3.0
    %v950 = vtanh.pop %v934
    %v951 = vtanh.pop %v935
    %v952 = vtanh.pop %v936
    %v953 = vtanh.pop %v937
    %v954 = vtanh.pop %v938
    %v955 = vtanh.pop %v939
    %v956 = vtanh.pop %v940
    %v957 = vtanh.pop %v941
    %v958 = vtanh.pop %v942
    %v959 = vtanh.pop %v943
    %v960 = vtanh.pop %v944
    %v961 = vtanh.pop %v945
    %v962 = vtanh.pop %v946
    %v963 = vtanh.pop %v947
    %v964 = vtanh.pop %v948
    %v965 = vtanh.pop %v949
    %v966 = vmax.f32 %v950, 0.0
    %v967 = vmax.f32 %v951, 0.0
    %v968 = vmax.f32 %v952, 0.0
    %v969 = vmax.f32 %v953, 0.0
    %v970 = vmax.f32 %v954, 0.0
    %v971 = vmax.f32 %v955, 0.0
    %v972 = vmax.f32 %v956, 0.0
    %v973 = vmax.f32 %v957, 0.0
    %v974 = vmax.f32 %v958, 0.0
    %v975 = vmax.f32 %v959, 0.0
    %v976 = vmax.f32 %v960, 0.0
    %v977 = vmax.f32 %v961, 0.0
    %v978 = vmax.f32 %v962, 0.0
    %v979 = vmax.f32 %v963, 0.0
    %v980 = vmax.f32 %v964, 0.0
    %v981 = vmax.f32 %v965, 0.0
    %v982 = vlaneseq
    %v983 = vand.u32 %v982, 127
    %v1000 = vand.u32 %v966, 4294967168
    %v1001 = vand.u32 %v967, 4294967168
    %v1002 = vand.u32 %v968, 4294967168
    %v1003 = vand.u32 %v969, 4294967168
    %v1004 = vand.u32 %v970, 4294967168
    %v1005 = vand.u32 %v971, 4294967168
    %v1006 = vand.u32 %v972, 4294967168
    %v1007 = vand.u32 %v973, 4294967168
    %v1008 = vand.u32 %v974, 4294967168
    %v1009 = vand.u32 %v975, 4294967168
    %v1010 = vand.u32 %v976, 4294967168
    %v1011 = vand.u32 %v977, 4294967168
    %v1012 = vand.u32 %v978, 4294967168
    %v1013 = vand.u32 %v979, 4294967168
    %v1014 = vand.u32 %v980, 4294967168
    %v1015 = vand.u32 %v981, 4294967168
    %v1016 = vor.u32 %v1000, %v983
    %v1017 = vor.u32 %v1001, %v983
    %v1018 = vor.u32 %v1002, %v983
    %v1019 = vor.u32 %v1003, %v983
    %v1020 = vor.u32 %v1004, %v983
    %v1021 = vor.u32 %v1005, %v983
    %v1022 = vor.u32 %v1006, %v983
    %v1023 = vor.u32 %v1007, %v983
    %v1024 = vor.u32 %v1008, %v983
    %v1025 = vor.u32 %v1009, %v983
    %v1026 = vor.u32 %v1010, %v983
    %v1027 = vor.u32 %v1011, %v983
    %v1028 = vor.u32 %v1012, %v983
    %v1029 = vor.u32 %v1013, %v983
    %v1030 = vor.u32 %v1014, %v983
    %v1031 = vor.u32 %v1015, %v983
    %v1032 = vand.u32 %v1016, 65535
    %v1033 = vshra.s32 %v1016, 16
    %v1034 = vcvt.s32.f32 %v1032
    %v1035 = vcvt.s32.f32 %v1033
    %1036 = vmax.xlane.f32.xlu0 %v1035
    %v1037 = vpop.xlane.xlu0 %1036
    %vm1038 = vcmp.eq.f32.partialorder %v1035, %v1037
    %v1039 = vsel %vm1038, %v1034, -inf
    %1040 = vmax.xlane.f32.xlu0 %v1039
    %v1041 = vpop.xlane.xlu0 %1040
    %v1042 = vcvt.f32.s32 %v1041
    %v1043 = vcvt.f32.s32 %v1037
    %v1044 = vshll.u32 %v1043, 16
    %v1045 = vadd.s32 %v1044, %v1042
    %v1046 = vand.u32 %v1017, 65535
    %v1047 = vshra.s32 %v1017, 16
    %v1048 = vcvt.s32.f32 %v1046
    %v1049 = vcvt.s32.f32 %v1047
    %1050 = vmax.xlane.f32.xlu0 %v1049
    %v1051 = vpop.xlane.xlu0 %1050
    %vm1052 = vcmp.eq.f32.partialorder %v1049, %v1051
    %v1053 = vsel %vm1052, %v1048, -inf
    %1054 = vmax.xlane.f32.xlu0 %v1053
    %v1055 = vpop.xlane.xlu0 %1054
    %v1056 = vcvt.f32.s32 %v1055
    %v1057 = vcvt.f32.s32 %v1051
    %v1058 = vshll.u32 %v1057, 16
    %v1059 = vadd.s32 %v1058, %v1056
    %v1060 = vand.u32 %v1018, 65535
    %v1061 = vshra.s32 %v1018, 16
    %v1062 = vcvt.s32.f32 %v1060
    %v1063 = vcvt.s32.f32 %v1061
    %1064 = vmax.xlane.f32.xlu0 %v1063
    %v1065 = vpop.xlane.xlu0 %1064
    %vm1066 = vcmp.eq.f32.partialorder %v1063, %v1065
    %v1067 = vsel %vm1066, %v1062, -inf
    %1068 = vmax.xlane.f32.xlu0 %v1067
    %v1069 = vpop.xlane.xlu0 %1068
    %v1070 = vcvt.f32.s32 %v1069
    %v1071 = vcvt.f32.s32 %v1065
    %v1072 = vshll.u32 %v1071, 16
    %v1073 = vadd.s32 %v1072, %v1070
    %v1074 = vand.u32 %v1019, 65535
    %v1075 = vshra.s32 %v1019, 16
    %v1076 = vcvt.s32.f32 %v1074
    %v1077 = vcvt.s32.f32 %v1075
    %1078 = vmax.xlane.f32.xlu0 %v1077
    %v1079 = vpop.xlane.xlu0 %1078
    %vm1080 = vcmp.eq.f32.partialorder %v1077, %v1079
    %v1081 = vsel %vm1080, %v1076, -inf
    %1082 = vmax.xlane.f32.xlu0 %v1081
    %v1083 = vpop.xlane.xlu0 %1082
    %v1084 = vcvt.f32.s32 %v1083
    %v1085 = vcvt.f32.s32 %v1079
    %v1086 = vshll.u32 %v1085, 16
    %v1087 = vadd.s32 %v1086, %v1084
    %v1088 = vand.u32 %v1020, 65535
    %v1089 = vshra.s32 %v1020, 16
    %v1090 = vcvt.s32.f32 %v1088
    %v1091 = vcvt.s32.f32 %v1089
    %1092 = vmax.xlane.f32.xlu0 %v1091
    %v1093 = vpop.xlane.xlu0 %1092
    %vm1094 = vcmp.eq.f32.partialorder %v1091, %v1093
    %v1095 = vsel %vm1094, %v1090, -inf
    %1096 = vmax.xlane.f32.xlu0 %v1095
    %v1097 = vpop.xlane.xlu0 %1096
    %v1098 = vcvt.f32.s32 %v1097
    %v1099 = vcvt.f32.s32 %v1093
    %v1100 = vshll.u32 %v1099, 16
    %v1101 = vadd.s32 %v1100, %v1098
    %v1102 = vand.u32 %v1021, 65535
    %v1103 = vshra.s32 %v1021, 16
    %v1104 = vcvt.s32.f32 %v1102
    %v1105 = vcvt.s32.f32 %v1103
    %1106 = vmax.xlane.f32.xlu0 %v1105
    %v1107 = vpop.xlane.xlu0 %1106
    %vm1108 = vcmp.eq.f32.partialorder %v1105, %v1107
    %v1109 = vsel %vm1108, %v1104, -inf
    %1110 = vmax.xlane.f32.xlu0 %v1109
    %v1111 = vpop.xlane.xlu0 %1110
    %v1112 = vcvt.f32.s32 %v1111
    %v1113 = vcvt.f32.s32 %v1107
    %v1114 = vshll.u32 %v1113, 16
    %v1115 = vadd.s32 %v1114, %v1112
    %v1116 = vand.u32 %v1022, 65535
    %v1117 = vshra.s32 %v1022, 16
    %v1118 = vcvt.s32.f32 %v1116
    %v1119 = vcvt.s32.f32 %v1117
    %1120 = vmax.xlane.f32.xlu0 %v1119
    %v1121 = vpop.xlane.xlu0 %1120
    %vm1122 = vcmp.eq.f32.partialorder %v1119, %v1121
    %v1123 = vsel %vm1122, %v1118, -inf
    %1124 = vmax.xlane.f32.xlu0 %v1123
    %v1125 = vpop.xlane.xlu0 %1124
    %v1126 = vcvt.f32.s32 %v1125
    %v1127 = vcvt.f32.s32 %v1121
    %v1128 = vshll.u32 %v1127, 16
    %v1129 = vadd.s32 %v1128, %v1126
    %v1130 = vand.u32 %v1023, 65535
    %v1131 = vshra.s32 %v1023, 16
    %v1132 = vcvt.s32.f32 %v1130
    %v1133 = vcvt.s32.f32 %v1131
    %1134 = vmax.xlane.f32.xlu0 %v1133
    %v1135 = vpop.xlane.xlu0 %1134
    %vm1136 = vcmp.eq.f32.partialorder %v1133, %v1135
    %v1137 = vsel %vm1136, %v1132, -inf
    %1138 = vmax.xlane.f32.xlu0 %v1137
    %v1139 = vpop.xlane.xlu0 %1138
    %v1140 = vcvt.f32.s32 %v1139
    %v1141 = vcvt.f32.s32 %v1135
    %v1142 = vshll.u32 %v1141, 16
    %v1143 = vadd.s32 %v1142, %v1140
    %v1144 = vand.u32 %v1024, 65535
    %v1145 = vshra.s32 %v1024, 16
    %v1146 = vcvt.s32.f32 %v1144
    %v1147 = vcvt.s32.f32 %v1145
    %1148 = vmax.xlane.f32.xlu0 %v1147
    %v1149 = vpop.xlane.xlu0 %1148
    %vm1150 = vcmp.eq.f32.partialorder %v1147, %v1149
    %v1151 = vsel %vm1150, %v1146, -inf
    %1152 = vmax.xlane.f32.xlu0 %v1151
    %v1153 = vpop.xlane.xlu0 %1152
    %v1154 = vcvt.f32.s32 %v1153
    %v1155 = vcvt.f32.s32 %v1149
    %v1156 = vshll.u32 %v1155, 16
    %v1157 = vadd.s32 %v1156, %v1154
    %v1158 = vand.u32 %v1025, 65535
    %v1159 = vshra.s32 %v1025, 16
    %v1160 = vcvt.s32.f32 %v1158
    %v1161 = vcvt.s32.f32 %v1159
    %1162 = vmax.xlane.f32.xlu0 %v1161
    %v1163 = vpop.xlane.xlu0 %1162
    %vm1164 = vcmp.eq.f32.partialorder %v1161, %v1163
    %v1165 = vsel %vm1164, %v1160, -inf
    %1166 = vmax.xlane.f32.xlu0 %v1165
    %v1167 = vpop.xlane.xlu0 %1166
    %v1168 = vcvt.f32.s32 %v1167
    %v1169 = vcvt.f32.s32 %v1163
    %v1170 = vshll.u32 %v1169, 16
    %v1171 = vadd.s32 %v1170, %v1168
    %v1172 = vand.u32 %v1026, 65535
    %v1173 = vshra.s32 %v1026, 16
    %v1174 = vcvt.s32.f32 %v1172
    %v1175 = vcvt.s32.f32 %v1173
    %1176 = vmax.xlane.f32.xlu0 %v1175
    %v1177 = vpop.xlane.xlu0 %1176
    %vm1178 = vcmp.eq.f32.partialorder %v1175, %v1177
    %v1179 = vsel %vm1178, %v1174, -inf
    %1180 = vmax.xlane.f32.xlu0 %v1179
    %v1181 = vpop.xlane.xlu0 %1180
    %v1182 = vcvt.f32.s32 %v1181
    %v1183 = vcvt.f32.s32 %v1177
    %v1184 = vshll.u32 %v1183, 16
    %v1185 = vadd.s32 %v1184, %v1182
    %v1186 = vand.u32 %v1027, 65535
    %v1187 = vshra.s32 %v1027, 16
    %v1188 = vcvt.s32.f32 %v1186
    %v1189 = vcvt.s32.f32 %v1187
    %1190 = vmax.xlane.f32.xlu0 %v1189
    %v1191 = vpop.xlane.xlu0 %1190
    %vm1192 = vcmp.eq.f32.partialorder %v1189, %v1191
    %v1193 = vsel %vm1192, %v1188, -inf
    %1194 = vmax.xlane.f32.xlu0 %v1193
    %v1195 = vpop.xlane.xlu0 %1194
    %v1196 = vcvt.f32.s32 %v1195
    %v1197 = vcvt.f32.s32 %v1191
    %v1198 = vshll.u32 %v1197, 16
    %v1199 = vadd.s32 %v1198, %v1196
    %v1200 = vand.u32 %v1028, 65535
    %v1201 = vshra.s32 %v1028, 16
    %v1202 = vcvt.s32.f32 %v1200
    %v1203 = vcvt.s32.f32 %v1201
    %1204 = vmax.xlane.f32.xlu0 %v1203
    %v1205 = vpop.xlane.xlu0 %1204
    %vm1206 = vcmp.eq.f32.partialorder %v1203, %v1205
    %v1207 = vsel %vm1206, %v1202, -inf
    %1208 = vmax.xlane.f32.xlu0 %v1207
    %v1209 = vpop.xlane.xlu0 %1208
    %v1210 = vcvt.f32.s32 %v1209
    %v1211 = vcvt.f32.s32 %v1205
    %v1212 = vshll.u32 %v1211, 16
    %v1213 = vadd.s32 %v1212, %v1210
    %v1214 = vand.u32 %v1029, 65535
    %v1215 = vshra.s32 %v1029, 16
    %v1216 = vcvt.s32.f32 %v1214
    %v1217 = vcvt.s32.f32 %v1215
    %1218 = vmax.xlane.f32.xlu0 %v1217
    %v1219 = vpop.xlane.xlu0 %1218
    %vm1220 = vcmp.eq.f32.partialorder %v1217, %v1219
    %v1221 = vsel %vm1220, %v1216, -inf
    %1222 = vmax.xlane.f32.xlu0 %v1221
    %v1223 = vpop.xlane.xlu0 %1222
    %v1224 = vcvt.f32.s32 %v1223
    %v1225 = vcvt.f32.s32 %v1219
    %v1226 = vshll.u32 %v1225, 16
    %v1227 = vadd.s32 %v1226, %v1224
    %v1228 = vand.u32 %v1030, 65535
    %v1229 = vshra.s32 %v1030, 16
    %v1230 = vcvt.s32.f32 %v1228
    %v1231 = vcvt.s32.f32 %v1229
    %1232 = vmax.xlane.f32.xlu0 %v1231
    %v1233 = vpop.xlane.xlu0 %1232
    %vm1234 = vcmp.eq.f32.partialorder %v1231, %v1233
    %v1235 = vsel %vm1234, %v1230, -inf
    %1236 = vmax.xlane.f32.xlu0 %v1235
    %v1237 = vpop.xlane.xlu0 %1236
    %v1238 = vcvt.f32.s32 %v1237
    %v1239 = vcvt.f32.s32 %v1233
    %v1240 = vshll.u32 %v1239, 16
    %v1241 = vadd.s32 %v1240, %v1238
    %v1242 = vand.u32 %v1031, 65535
    %v1243 = vshra.s32 %v1031, 16
    %v1244 = vcvt.s32.f32 %v1242
    %v1245 = vcvt.s32.f32 %v1243
    %1246 = vmax.xlane.f32.xlu0 %v1245
    %v1247 = vpop.xlane.xlu0 %1246
    %vm1248 = vcmp.eq.f32.partialorder %v1245, %v1247
    %v1249 = vsel %vm1248, %v1244, -inf
    %1250 = vmax.xlane.f32.xlu0 %v1249
    %v1251 = vpop.xlane.xlu0 %1250
    %v1252 = vcvt.f32.s32 %v1251
    %v1253 = vcvt.f32.s32 %v1247
    %v1254 = vshll.u32 %v1253, 16
    %v1255 = vadd.s32 %v1254, %v1252
    %v1256 = vand.u32 %v1045, 127
    %v1257 = vand.u32 %v1059, 127
    %v1258 = vand.u32 %v1073, 127
    %v1259 = vand.u32 %v1087, 127
    %v1260 = vand.u32 %v1101, 127
    %v1261 = vand.u32 %v1115, 127
    %v1262 = vand.u32 %v1129, 127
    %v1263 = vand.u32 %v1143, 127
    %v1264 = vand.u32 %v1157, 127
    %v1265 = vand.u32 %v1171, 127
    %v1266 = vand.u32 %v1185, 127
    %v1267 = vand.u32 %v1199, 127
    %v1268 = vand.u32 %v1213, 127
    %v1269 = vand.u32 %v1227, 127
    %v1270 = vand.u32 %v1241, 127
    %v1271 = vand.u32 %v1255, 127
    %vm1272 = vcmask 7168
    %1273 = vst.msk [vmem:[%s7] sm:$0xff] %vm1272, %v1256
    %1274 = vst.msk [vmem:[%s7 + $0x8] sm:$0xff] %vm1272, %v1257
    %1275 = vst.msk [vmem:[%s7 + $0x10] sm:$0xff] %vm1272, %v1258
    %1276 = vst.msk [vmem:[%s7 + $0x18] sm:$0xff] %vm1272, %v1259
    %1277 = vst.msk [vmem:[%s7 + $0x20] sm:$0xff] %vm1272, %v1260
    %1278 = vst.msk [vmem:[%s7 + $0x28] sm:$0xff] %vm1272, %v1261
    %1279 = vst.msk [vmem:[%s7 + $0x30] sm:$0xff] %vm1272, %v1262
    %1280 = vst.msk [vmem:[%s7 + $0x38] sm:$0xff] %vm1272, %v1263
    %1281 = vst.msk [vmem:[%s7 + $0x40] sm:$0xff] %vm1272, %v1264
    %1282 = vst.msk [vmem:[%s7 + $0x48] sm:$0xff] %vm1272, %v1265
    %1283 = vst.msk [vmem:[%s7 + $0x50] sm:$0xff] %vm1272, %v1266
    %1284 = vst.msk [vmem:[%s7 + $0x58] sm:$0xff] %vm1272, %v1267
    %1285 = vst.msk [vmem:[%s7 + $0x60] sm:$0xff] %vm1272, %v1268
    %1286 = vst.msk [vmem:[%s7 + $0x68] sm:$0xff] %vm1272, %v1269
    %1287 = vst.msk [vmem:[%s7 + $0x70] sm:$0xff] %vm1272, %v1270
    %1288 = vst.msk [vmem:[%s7 + $0x78] sm:$0xff] %vm1272, %v1271
    %v1289 = vand.u32 %v1045, 4294967168
    %v1290 = vand.u32 %v1059, 4294967168
    %v1291 = vand.u32 %v1073, 4294967168
    %v1292 = vand.u32 %v1087, 4294967168
    %v1293 = vand.u32 %v1101, 4294967168
    %v1294 = vand.u32 %v1115, 4294967168
    %v1295 = vand.u32 %v1129, 4294967168
    %v1296 = vand.u32 %v1143, 4294967168
    %v1297 = vand.u32 %v1157, 4294967168
    %v1298 = vand.u32 %v1171, 4294967168
    %v1299 = vand.u32 %v1185, 4294967168
    %v1300 = vand.u32 %v1199, 4294967168
    %v1301 = vand.u32 %v1213, 4294967168
    %v1302 = vand.u32 %v1227, 4294967168
    %v1303 = vand.u32 %v1241, 4294967168
    %v1304 = vand.u32 %v1255, 4294967168
    %1321 = vst.msk [vmem:[%s8] sm:$0xff] %vm1272, %v1289
    %1322 = vst.msk [vmem:[%s8 + $0x8] sm:$0xff] %vm1272, %v1290
    %1323 = vst.msk [vmem:[%s8 + $0x10] sm:$0xff] %vm1272, %v1291
    %1324 = vst.msk [vmem:[%s8 + $0x18] sm:$0xff] %vm1272, %v1292
    %1325 = vst.msk [vmem:[%s8 + $0x20] sm:$0xff] %vm1272, %v1293
    %1326 = vst.msk [vmem:[%s8 + $0x28] sm:$0xff] %vm1272, %v1294
    %1327 = vst.msk [vmem:[%s8 + $0x30] sm:$0xff] %vm1272, %v1295
    %1328 = vst.msk [vmem:[%s8 + $0x38] sm:$0xff] %vm1272, %v1296
    %1329 = vst.msk [vmem:[%s8 + $0x40] sm:$0xff] %vm1272, %v1297
    %1330 = vst.msk [vmem:[%s8 + $0x48] sm:$0xff] %vm1272, %v1298
    %1331 = vst.msk [vmem:[%s8 + $0x50] sm:$0xff] %vm1272, %v1299
    %1332 = vst.msk [vmem:[%s8 + $0x58] sm:$0xff] %vm1272, %v1300
    %1333 = vst.msk [vmem:[%s8 + $0x60] sm:$0xff] %vm1272, %v1301
    %1334 = vst.msk [vmem:[%s8 + $0x68] sm:$0xff] %vm1272, %v1302
    %1335 = vst.msk [vmem:[%s8 + $0x70] sm:$0xff] %vm1272, %v1303
    %1336 = vst.msk [vmem:[%s8 + $0x78] sm:$0xff] %vm1272, %v1304
    %vm1337 = vcmp.eq.s32.totalorder %v1016, %v1045
    %vm1338 = vcmp.eq.s32.totalorder %v1017, %v1059
    %vm1339 = vcmp.eq.s32.totalorder %v1018, %v1073
    %vm1340 = vcmp.eq.s32.totalorder %v1019, %v1087
    %vm1341 = vcmp.eq.s32.totalorder %v1020, %v1101
    %vm1342 = vcmp.eq.s32.totalorder %v1021, %v1115
    %vm1343 = vcmp.eq.s32.totalorder %v1022, %v1129
    %vm1344 = vcmp.eq.s32.totalorder %v1023, %v1143
    %vm1345 = vcmp.eq.s32.totalorder %v1024, %v1157
    %vm1346 = vcmp.eq.s32.totalorder %v1025, %v1171
    %vm1347 = vcmp.eq.s32.totalorder %v1026, %v1185
    %vm1348 = vcmp.eq.s32.totalorder %v1027, %v1199
    %vm1349 = vcmp.eq.s32.totalorder %v1028, %v1213
    %vm1350 = vcmp.eq.s32.totalorder %v1029, %v1227
    %vm1351 = vcmp.eq.s32.totalorder %v1030, %v1241
    %vm1352 = vcmp.eq.s32.totalorder %v1031, %v1255
    %v1353 = vsel %vm1337, 4294967295, %v1016
    %v1354 = vsel %vm1338, 4294967295, %v1017
    %v1355 = vsel %vm1339, 4294967295, %v1018
    %v1356 = vsel %vm1340, 4294967295, %v1019
    %v1357 = vsel %vm1341, 4294967295, %v1020
    %v1358 = vsel %vm1342, 4294967295, %v1021
    %v1359 = vsel %vm1343, 4294967295, %v1022
    %v1360 = vsel %vm1344, 4294967295, %v1023
    %v1361 = vsel %vm1345, 4294967295, %v1024
    %v1362 = vsel %vm1346, 4294967295, %v1025
    %v1363 = vsel %vm1347, 4294967295, %v1026
    %v1364 = vsel %vm1348, 4294967295, %v1027
    %v1365 = vsel %vm1349, 4294967295, %v1028
    %v1366 = vsel %vm1350, 4294967295, %v1029
    %v1367 = vsel %vm1351, 4294967295, %v1030
    %v1368 = vsel %vm1352, 4294967295, %v1031
    %v1369 = vand.u32 %v1353, 65535
    %v1370 = vshra.s32 %v1353, 16
    %v1371 = vcvt.s32.f32 %v1369
    %v1372 = vcvt.s32.f32 %v1370
    %1373 = vmax.xlane.f32.xlu0 %v1372
    %v1374 = vpop.xlane.xlu0 %1373
    %vm1375 = vcmp.eq.f32.partialorder %v1372, %v1374
    %v1376 = vsel %vm1375, %v1371, -inf
    %1377 = vmax.xlane.f32.xlu0 %v1376
    %v1378 = vpop.xlane.xlu0 %1377
    %v1379 = vcvt.f32.s32 %v1378
    %v1380 = vcvt.f32.s32 %v1374
    %v1381 = vshll.u32 %v1380, 16
    %v1382 = vadd.s32 %v1381, %v1379
    %v1383 = vand.u32 %v1354, 65535
    %v1384 = vshra.s32 %v1354, 16
    %v1385 = vcvt.s32.f32 %v1383
    %v1386 = vcvt.s32.f32 %v1384
    %1387 = vmax.xlane.f32.xlu0 %v1386
    %v1388 = vpop.xlane.xlu0 %1387
    %vm1389 = vcmp.eq.f32.partialorder %v1386, %v1388
    %v1390 = vsel %vm1389, %v1385, -inf
    %1391 = vmax.xlane.f32.xlu0 %v1390
    %v1392 = vpop.xlane.xlu0 %1391
    %v1393 = vcvt.f32.s32 %v1392
    %v1394 = vcvt.f32.s32 %v1388
    %v1395 = vshll.u32 %v1394, 16
    %v1396 = vadd.s32 %v1395, %v1393
    %v1397 = vand.u32 %v1355, 65535
    %v1398 = vshra.s32 %v1355, 16
    %v1399 = vcvt.s32.f32 %v1397
    %v1400 = vcvt.s32.f32 %v1398
    %1401 = vmax.xlane.f32.xlu0 %v1400
    %v1402 = vpop.xlane.xlu0 %1401
    %vm1403 = vcmp.eq.f32.partialorder %v1400, %v1402
    %v1404 = vsel %vm1403, %v1399, -inf
    %1405 = vmax.xlane.f32.xlu0 %v1404
    %v1406 = vpop.xlane.xlu0 %1405
    %v1407 = vcvt.f32.s32 %v1406
    %v1408 = vcvt.f32.s32 %v1402
    %v1409 = vshll.u32 %v1408, 16
    %v1410 = vadd.s32 %v1409, %v1407
    %v1411 = vand.u32 %v1356, 65535
    %v1412 = vshra.s32 %v1356, 16
    %v1413 = vcvt.s32.f32 %v1411
    %v1414 = vcvt.s32.f32 %v1412
    %1415 = vmax.xlane.f32.xlu0 %v1414
    %v1416 = vpop.xlane.xlu0 %1415
    %vm1417 = vcmp.eq.f32.partialorder %v1414, %v1416
    %v1418 = vsel %vm1417, %v1413, -inf
    %1419 = vmax.xlane.f32.xlu0 %v1418
    %v1420 = vpop.xlane.xlu0 %1419
    %v1421 = vcvt.f32.s32 %v1420
    %v1422 = vcvt.f32.s32 %v1416
    %v1423 = vshll.u32 %v1422, 16
    %v1424 = vadd.s32 %v1423, %v1421
    %v1425 = vand.u32 %v1357, 65535
    %v1426 = vshra.s32 %v1357, 16
    %v1427 = vcvt.s32.f32 %v1425
    %v1428 = vcvt.s32.f32 %v1426
    %1429 = vmax.xlane.f32.xlu0 %v1428
    %v1430 = vpop.xlane.xlu0 %1429
    %vm1431 = vcmp.eq.f32.partialorder %v1428, %v1430
    %v1432 = vsel %vm1431, %v1427, -inf
    %1433 = vmax.xlane.f32.xlu0 %v1432
    %v1434 = vpop.xlane.xlu0 %1433
    %v1435 = vcvt.f32.s32 %v1434
    %v1436 = vcvt.f32.s32 %v1430
    %v1437 = vshll.u32 %v1436, 16
    %v1438 = vadd.s32 %v1437, %v1435
    %v1439 = vand.u32 %v1358, 65535
    %v1440 = vshra.s32 %v1358, 16
    %v1441 = vcvt.s32.f32 %v1439
    %v1442 = vcvt.s32.f32 %v1440
    %1443 = vmax.xlane.f32.xlu0 %v1442
    %v1444 = vpop.xlane.xlu0 %1443
    %vm1445 = vcmp.eq.f32.partialorder %v1442, %v1444
    %v1446 = vsel %vm1445, %v1441, -inf
    %1447 = vmax.xlane.f32.xlu0 %v1446
    %v1448 = vpop.xlane.xlu0 %1447
    %v1449 = vcvt.f32.s32 %v1448
    %v1450 = vcvt.f32.s32 %v1444
    %v1451 = vshll.u32 %v1450, 16
    %v1452 = vadd.s32 %v1451, %v1449
    %v1453 = vand.u32 %v1359, 65535
    %v1454 = vshra.s32 %v1359, 16
    %v1455 = vcvt.s32.f32 %v1453
    %v1456 = vcvt.s32.f32 %v1454
    %1457 = vmax.xlane.f32.xlu0 %v1456
    %v1458 = vpop.xlane.xlu0 %1457
    %vm1459 = vcmp.eq.f32.partialorder %v1456, %v1458
    %v1460 = vsel %vm1459, %v1455, -inf
    %1461 = vmax.xlane.f32.xlu0 %v1460
    %v1462 = vpop.xlane.xlu0 %1461
    %v1463 = vcvt.f32.s32 %v1462
    %v1464 = vcvt.f32.s32 %v1458
    %v1465 = vshll.u32 %v1464, 16
    %v1466 = vadd.s32 %v1465, %v1463
    %v1467 = vand.u32 %v1360, 65535
    %v1468 = vshra.s32 %v1360, 16
    %v1469 = vcvt.s32.f32 %v1467
    %v1470 = vcvt.s32.f32 %v1468
    %1471 = vmax.xlane.f32.xlu0 %v1470
    %v1472 = vpop.xlane.xlu0 %1471
    %vm1473 = vcmp.eq.f32.partialorder %v1470, %v1472
    %v1474 = vsel %vm1473, %v1469, -inf
    %1475 = vmax.xlane.f32.xlu0 %v1474
    %v1476 = vpop.xlane.xlu0 %1475
    %v1477 = vcvt.f32.s32 %v1476
    %v1478 = vcvt.f32.s32 %v1472
    %v1479 = vshll.u32 %v1478, 16
    %v1480 = vadd.s32 %v1479, %v1477
    %v1481 = vand.u32 %v1361, 65535
    %v1482 = vshra.s32 %v1361, 16
    %v1483 = vcvt.s32.f32 %v1481
    %v1484 = vcvt.s32.f32 %v1482
    %1485 = vmax.xlane.f32.xlu0 %v1484
    %v1486 = vpop.xlane.xlu0 %1485
    %vm1487 = vcmp.eq.f32.partialorder %v1484, %v1486
    %v1488 = vsel %vm1487, %v1483, -inf
    %1489 = vmax.xlane.f32.xlu0 %v1488
    %v1490 = vpop.xlane.xlu0 %1489
    %v1491 = vcvt.f32.s32 %v1490
    %v1492 = vcvt.f32.s32 %v1486
    %v1493 = vshll.u32 %v1492, 16
    %v1494 = vadd.s32 %v1493, %v1491
    %v1495 = vand.u32 %v1362, 65535
    %v1496 = vshra.s32 %v1362, 16
    %v1497 = vcvt.s32.f32 %v1495
    %v1498 = vcvt.s32.f32 %v1496
    %1499 = vmax.xlane.f32.xlu0 %v1498
    %v1500 = vpop.xlane.xlu0 %1499
    %vm1501 = vcmp.eq.f32.partialorder %v1498, %v1500
    %v1502 = vsel %vm1501, %v1497, -inf
    %1503 = vmax.xlane.f32.xlu0 %v1502
    %v1504 = vpop.xlane.xlu0 %1503
    %v1505 = vcvt.f32.s32 %v1504
    %v1506 = vcvt.f32.s32 %v1500
    %v1507 = vshll.u32 %v1506, 16
    %v1508 = vadd.s32 %v1507, %v1505
    %v1509 = vand.u32 %v1363, 65535
    %v1510 = vshra.s32 %v1363, 16
    %v1511 = vcvt.s32.f32 %v1509
    %v1512 = vcvt.s32.f32 %v1510
    %1513 = vmax.xlane.f32.xlu0 %v1512
    %v1514 = vpop.xlane.xlu0 %1513
    %vm1515 = vcmp.eq.f32.partialorder %v1512, %v1514
    %v1516 = vsel %vm1515, %v1511, -inf
    %1517 = vmax.xlane.f32.xlu0 %v1516
    %v1518 = vpop.xlane.xlu0 %1517
    %v1519 = vcvt.f32.s32 %v1518
    %v1520 = vcvt.f32.s32 %v1514
    %v1521 = vshll.u32 %v1520, 16
    %v1522 = vadd.s32 %v1521, %v1519
    %v1523 = vand.u32 %v1364, 65535
    %v1524 = vshra.s32 %v1364, 16
    %v1525 = vcvt.s32.f32 %v1523
    %v1526 = vcvt.s32.f32 %v1524
    %1527 = vmax.xlane.f32.xlu0 %v1526
    %v1528 = vpop.xlane.xlu0 %1527
    %vm1529 = vcmp.eq.f32.partialorder %v1526, %v1528
    %v1530 = vsel %vm1529, %v1525, -inf
    %1531 = vmax.xlane.f32.xlu0 %v1530
    %v1532 = vpop.xlane.xlu0 %1531
    %v1533 = vcvt.f32.s32 %v1532
    %v1534 = vcvt.f32.s32 %v1528
    %v1535 = vshll.u32 %v1534, 16
    %v1536 = vadd.s32 %v1535, %v1533
    %v1537 = vand.u32 %v1365, 65535
    %v1538 = vshra.s32 %v1365, 16
    %v1539 = vcvt.s32.f32 %v1537
    %v1540 = vcvt.s32.f32 %v1538
    %1541 = vmax.xlane.f32.xlu0 %v1540
    %v1542 = vpop.xlane.xlu0 %1541
    %vm1543 = vcmp.eq.f32.partialorder %v1540, %v1542
    %v1544 = vsel %vm1543, %v1539, -inf
    %1545 = vmax.xlane.f32.xlu0 %v1544
    %v1546 = vpop.xlane.xlu0 %1545
    %v1547 = vcvt.f32.s32 %v1546
    %v1548 = vcvt.f32.s32 %v1542
    %v1549 = vshll.u32 %v1548, 16
    %v1550 = vadd.s32 %v1549, %v1547
    %v1551 = vand.u32 %v1366, 65535
    %v1552 = vshra.s32 %v1366, 16
    %v1553 = vcvt.s32.f32 %v1551
    %v1554 = vcvt.s32.f32 %v1552
    %1555 = vmax.xlane.f32.xlu0 %v1554
    %v1556 = vpop.xlane.xlu0 %1555
    %vm1557 = vcmp.eq.f32.partialorder %v1554, %v1556
    %v1558 = vsel %vm1557, %v1553, -inf
    %1559 = vmax.xlane.f32.xlu0 %v1558
    %v1560 = vpop.xlane.xlu0 %1559
    %v1561 = vcvt.f32.s32 %v1560
    %v1562 = vcvt.f32.s32 %v1556
    %v1563 = vshll.u32 %v1562, 16
    %v1564 = vadd.s32 %v1563, %v1561
    %v1565 = vand.u32 %v1367, 65535
    %v1566 = vshra.s32 %v1367, 16
    %v1567 = vcvt.s32.f32 %v1565
    %v1568 = vcvt.s32.f32 %v1566
    %1569 = vmax.xlane.f32.xlu0 %v1568
    %v1570 = vpop.xlane.xlu0 %1569
    %vm1571 = vcmp.eq.f32.partialorder %v1568, %v1570
    %v1572 = vsel %vm1571, %v1567, -inf
    %1573 = vmax.xlane.f32.xlu0 %v1572
    %v1574 = vpop.xlane.xlu0 %1573
    %v1575 = vcvt.f32.s32 %v1574
    %v1576 = vcvt.f32.s32 %v1570
    %v1577 = vshll.u32 %v1576, 16
    %v1578 = vadd.s32 %v1577, %v1575
    %v1579 = vand.u32 %v1368, 65535
    %v1580 = vshra.s32 %v1368, 16
    %v1581 = vcvt.s32.f32 %v1579
    %v1582 = vcvt.s32.f32 %v1580
    %1583 = vmax.xlane.f32.xlu0 %v1582
    %v1584 = vpop.xlane.xlu0 %1583
    %vm1585 = vcmp.eq.f32.partialorder %v1582, %v1584
    %v1586 = vsel %vm1585, %v1581, -inf
    %1587 = vmax.xlane.f32.xlu0 %v1586
    %v1588 = vpop.xlane.xlu0 %1587
    %v1589 = vcvt.f32.s32 %v1588
    %v1590 = vcvt.f32.s32 %v1584
    %v1591 = vshll.u32 %v1590, 16
    %v1592 = vadd.s32 %v1591, %v1589
    %v1593 = vand.u32 %v1382, 127
    %v1594 = vand.u32 %v1396, 127
    %v1595 = vand.u32 %v1410, 127
    %v1596 = vand.u32 %v1424, 127
    %v1597 = vand.u32 %v1438, 127
    %v1598 = vand.u32 %v1452, 127
    %v1599 = vand.u32 %v1466, 127
    %v1600 = vand.u32 %v1480, 127
    %v1601 = vand.u32 %v1494, 127
    %v1602 = vand.u32 %v1508, 127
    %v1603 = vand.u32 %v1522, 127
    %v1604 = vand.u32 %v1536, 127
    %v1605 = vand.u32 %v1550, 127
    %v1606 = vand.u32 %v1564, 127
    %v1607 = vand.u32 %v1578, 127
    %v1608 = vand.u32 %v1592, 127
    %vm1609 = vcmask 15368
    %1610 = vst.msk [vmem:[%s7] sm:$0xff] %vm1609, %v1593
    %1611 = vst.msk [vmem:[%s7 + $0x8] sm:$0xff] %vm1609, %v1594
    %1612 = vst.msk [vmem:[%s7 + $0x10] sm:$0xff] %vm1609, %v1595
    %1613 = vst.msk [vmem:[%s7 + $0x18] sm:$0xff] %vm1609, %v1596
    %1614 = vst.msk [vmem:[%s7 + $0x20] sm:$0xff] %vm1609, %v1597
    %1615 = vst.msk [vmem:[%s7 + $0x28] sm:$0xff] %vm1609, %v1598
    %1616 = vst.msk [vmem:[%s7 + $0x30] sm:$0xff] %vm1609, %v1599
    %1617 = vst.msk [vmem:[%s7 + $0x38] sm:$0xff] %vm1609, %v1600
    %1618 = vst.msk [vmem:[%s7 + $0x40] sm:$0xff] %vm1609, %v1601
    %1619 = vst.msk [vmem:[%s7 + $0x48] sm:$0xff] %vm1609, %v1602
    %1620 = vst.msk [vmem:[%s7 + $0x50] sm:$0xff] %vm1609, %v1603
    %1621 = vst.msk [vmem:[%s7 + $0x58] sm:$0xff] %vm1609, %v1604
    %1622 = vst.msk [vmem:[%s7 + $0x60] sm:$0xff] %vm1609, %v1605
    %1623 = vst.msk [vmem:[%s7 + $0x68] sm:$0xff] %vm1609, %v1606
    %1624 = vst.msk [vmem:[%s7 + $0x70] sm:$0xff] %vm1609, %v1607
    %1625 = vst.msk [vmem:[%s7 + $0x78] sm:$0xff] %vm1609, %v1608
    %v1626 = vand.u32 %v1382, 4294967168
    %v1627 = vand.u32 %v1396, 4294967168
    %v1628 = vand.u32 %v1410, 4294967168
    %v1629 = vand.u32 %v1424, 4294967168
    %v1630 = vand.u32 %v1438, 4294967168
    %v1631 = vand.u32 %v1452, 4294967168
    %v1632 = vand.u32 %v1466, 4294967168
    %v1633 = vand.u32 %v1480, 4294967168
    %v1634 = vand.u32 %v1494, 4294967168
    %v1635 = vand.u32 %v1508, 4294967168
    %v1636 = vand.u32 %v1522, 4294967168
    %v1637 = vand.u32 %v1536, 4294967168
    %v1638 = vand.u32 %v1550, 4294967168
    %v1639 = vand.u32 %v1564, 4294967168
    %v1640 = vand.u32 %v1578, 4294967168
    %v1641 = vand.u32 %v1592, 4294967168
    %1658 = vst.msk [vmem:[%s8] sm:$0xff] %vm1609, %v1626
    %1659 = vst.msk [vmem:[%s8 + $0x8] sm:$0xff] %vm1609, %v1627
    %1660 = vst.msk [vmem:[%s8 + $0x10] sm:$0xff] %vm1609, %v1628
    %1661 = vst.msk [vmem:[%s8 + $0x18] sm:$0xff] %vm1609, %v1629
    %1662 = vst.msk [vmem:[%s8 + $0x20] sm:$0xff] %vm1609, %v1630
    %1663 = vst.msk [vmem:[%s8 + $0x28] sm:$0xff] %vm1609, %v1631
    %1664 = vst.msk [vmem:[%s8 + $0x30] sm:$0xff] %vm1609, %v1632
    %1665 = vst.msk [vmem:[%s8 + $0x38] sm:$0xff] %vm1609, %v1633
    %1666 = vst.msk [vmem:[%s8 + $0x40] sm:$0xff] %vm1609, %v1634
    %1667 = vst.msk [vmem:[%s8 + $0x48] sm:$0xff] %vm1609, %v1635
    %1668 = vst.msk [vmem:[%s8 + $0x50] sm:$0xff] %vm1609, %v1636
    %1669 = vst.msk [vmem:[%s8 + $0x58] sm:$0xff] %vm1609, %v1637
    %1670 = vst.msk [vmem:[%s8 + $0x60] sm:$0xff] %vm1609, %v1638
    %1671 = vst.msk [vmem:[%s8 + $0x68] sm:$0xff] %vm1609, %v1639
    %1672 = vst.msk [vmem:[%s8 + $0x70] sm:$0xff] %vm1609, %v1640
    %1673 = vst.msk [vmem:[%s8 + $0x78] sm:$0xff] %vm1609, %v1641
    %vm1674 = vcmp.eq.s32.totalorder %v1353, %v1382
    %vm1675 = vcmp.eq.s32.totalorder %v1354, %v1396
    %vm1676 = vcmp.eq.s32.totalorder %v1355, %v1410
    %vm1677 = vcmp.eq.s32.totalorder %v1356, %v1424
    %vm1678 = vcmp.eq.s32.totalorder %v1357, %v1438
    %vm1679 = vcmp.eq.s32.totalorder %v1358, %v1452
    %vm1680 = vcmp.eq.s32.totalorder %v1359, %v1466
    %vm1681 = vcmp.eq.s32.totalorder %v1360, %v1480
    %vm1682 = vcmp.eq.s32.totalorder %v1361, %v1494
    %vm1683 = vcmp.eq.s32.totalorder %v1362, %v1508
    %vm1684 = vcmp.eq.s32.totalorder %v1363, %v1522
    %vm1685 = vcmp.eq.s32.totalorder %v1364, %v1536
    %vm1686 = vcmp.eq.s32.totalorder %v1365, %v1550
    %vm1687 = vcmp.eq.s32.totalorder %v1366, %v1564
    %vm1688 = vcmp.eq.s32.totalorder %v1367, %v1578
    %vm1689 = vcmp.eq.s32.totalorder %v1368, %v1592
    %v1690 = vsel %vm1674, 4294967295, %v1353
    %v1691 = vsel %vm1675, 4294967295, %v1354
    %v1692 = vsel %vm1676, 4294967295, %v1355
    %v1693 = vsel %vm1677, 4294967295, %v1356
    %v1694 = vsel %vm1678, 4294967295, %v1357
    %v1695 = vsel %vm1679, 4294967295, %v1358
    %v1696 = vsel %vm1680, 4294967295, %v1359
    %v1697 = vsel %vm1681, 4294967295, %v1360
    %v1698 = vsel %vm1682, 4294967295, %v1361
    %v1699 = vsel %vm1683, 4294967295, %v1362
    %v1700 = vsel %vm1684, 4294967295, %v1363
    %v1701 = vsel %vm1685, 4294967295, %v1364
    %v1702 = vsel %vm1686, 4294967295, %v1365
    %v1703 = vsel %vm1687, 4294967295, %v1366
    %v1704 = vsel %vm1688, 4294967295, %v1367
    %v1705 = vsel %vm1689, 4294967295, %v1368
    %v1706 = vand.u32 %v1690, 65535
    %v1707 = vshra.s32 %v1690, 16
    %v1708 = vcvt.s32.f32 %v1706
    %v1709 = vcvt.s32.f32 %v1707
    %1710 = vmax.xlane.f32.xlu0 %v1709
    %v1711 = vpop.xlane.xlu0 %1710
    %vm1712 = vcmp.eq.f32.partialorder %v1709, %v1711
    %v1713 = vsel %vm1712, %v1708, -inf
    %1714 = vmax.xlane.f32.xlu0 %v1713
    %v1715 = vpop.xlane.xlu0 %1714
    %v1716 = vcvt.f32.s32 %v1715
    %v1717 = vcvt.f32.s32 %v1711
    %v1718 = vshll.u32 %v1717, 16
    %v1719 = vadd.s32 %v1718, %v1716
    %v1720 = vand.u32 %v1691, 65535
    %v1721 = vshra.s32 %v1691, 16
    %v1722 = vcvt.s32.f32 %v1720
    %v1723 = vcvt.s32.f32 %v1721
    %1724 = vmax.xlane.f32.xlu0 %v1723
    %v1725 = vpop.xlane.xlu0 %1724
    %vm1726 = vcmp.eq.f32.partialorder %v1723, %v1725
    %v1727 = vsel %vm1726, %v1722, -inf
    %1728 = vmax.xlane.f32.xlu0 %v1727
    %v1729 = vpop.xlane.xlu0 %1728
    %v1730 = vcvt.f32.s32 %v1729
    %v1731 = vcvt.f32.s32 %v1725
    %v1732 = vshll.u32 %v1731, 16
    %v1733 = vadd.s32 %v1732, %v1730
    %v1734 = vand.u32 %v1692, 65535
    %v1735 = vshra.s32 %v1692, 16
    %v1736 = vcvt.s32.f32 %v1734
    %v1737 = vcvt.s32.f32 %v1735
    %1738 = vmax.xlane.f32.xlu0 %v1737
    %v1739 = vpop.xlane.xlu0 %1738
    %vm1740 = vcmp.eq.f32.partialorder %v1737, %v1739
    %v1741 = vsel %vm1740, %v1736, -inf
    %1742 = vmax.xlane.f32.xlu0 %v1741
    %v1743 = vpop.xlane.xlu0 %1742
    %v1744 = vcvt.f32.s32 %v1743
    %v1745 = vcvt.f32.s32 %v1739
    %v1746 = vshll.u32 %v1745, 16
    %v1747 = vadd.s32 %v1746, %v1744
    %v1748 = vand.u32 %v1693, 65535
    %v1749 = vshra.s32 %v1693, 16
    %v1750 = vcvt.s32.f32 %v1748
    %v1751 = vcvt.s32.f32 %v1749
    %1752 = vmax.xlane.f32.xlu0 %v1751
    %v1753 = vpop.xlane.xlu0 %1752
    %vm1754 = vcmp.eq.f32.partialorder %v1751, %v1753
    %v1755 = vsel %vm1754, %v1750, -inf
    %1756 = vmax.xlane.f32.xlu0 %v1755
    %v1757 = vpop.xlane.xlu0 %1756
    %v1758 = vcvt.f32.s32 %v1757
    %v1759 = vcvt.f32.s32 %v1753
    %v1760 = vshll.u32 %v1759, 16
    %v1761 = vadd.s32 %v1760, %v1758
    %v1762 = vand.u32 %v1694, 65535
    %v1763 = vshra.s32 %v1694, 16
    %v1764 = vcvt.s32.f32 %v1762
    %v1765 = vcvt.s32.f32 %v1763
    %1766 = vmax.xlane.f32.xlu0 %v1765
    %v1767 = vpop.xlane.xlu0 %1766
    %vm1768 = vcmp.eq.f32.partialorder %v1765, %v1767
    %v1769 = vsel %vm1768, %v1764, -inf
    %1770 = vmax.xlane.f32.xlu0 %v1769
    %v1771 = vpop.xlane.xlu0 %1770
    %v1772 = vcvt.f32.s32 %v1771
    %v1773 = vcvt.f32.s32 %v1767
    %v1774 = vshll.u32 %v1773, 16
    %v1775 = vadd.s32 %v1774, %v1772
    %v1776 = vand.u32 %v1695, 65535
    %v1777 = vshra.s32 %v1695, 16
    %v1778 = vcvt.s32.f32 %v1776
    %v1779 = vcvt.s32.f32 %v1777
    %1780 = vmax.xlane.f32.xlu0 %v1779
    %v1781 = vpop.xlane.xlu0 %1780
    %vm1782 = vcmp.eq.f32.partialorder %v1779, %v1781
    %v1783 = vsel %vm1782, %v1778, -inf
    %1784 = vmax.xlane.f32.xlu0 %v1783
    %v1785 = vpop.xlane.xlu0 %1784
    %v1786 = vcvt.f32.s32 %v1785
    %v1787 = vcvt.f32.s32 %v1781
    %v1788 = vshll.u32 %v1787, 16
    %v1789 = vadd.s32 %v1788, %v1786
    %v1790 = vand.u32 %v1696, 65535
    %v1791 = vshra.s32 %v1696, 16
    %v1792 = vcvt.s32.f32 %v1790
    %v1793 = vcvt.s32.f32 %v1791
    %1794 = vmax.xlane.f32.xlu0 %v1793
    %v1795 = vpop.xlane.xlu0 %1794
    %vm1796 = vcmp.eq.f32.partialorder %v1793, %v1795
    %v1797 = vsel %vm1796, %v1792, -inf
    %1798 = vmax.xlane.f32.xlu0 %v1797
    %v1799 = vpop.xlane.xlu0 %1798
    %v1800 = vcvt.f32.s32 %v1799
    %v1801 = vcvt.f32.s32 %v1795
    %v1802 = vshll.u32 %v1801, 16
    %v1803 = vadd.s32 %v1802, %v1800
    %v1804 = vand.u32 %v1697, 65535
    %v1805 = vshra.s32 %v1697, 16
    %v1806 = vcvt.s32.f32 %v1804
    %v1807 = vcvt.s32.f32 %v1805
    %1808 = vmax.xlane.f32.xlu0 %v1807
    %v1809 = vpop.xlane.xlu0 %1808
    %vm1810 = vcmp.eq.f32.partialorder %v1807, %v1809
    %v1811 = vsel %vm1810, %v1806, -inf
    %1812 = vmax.xlane.f32.xlu0 %v1811
    %v1813 = vpop.xlane.xlu0 %1812
    %v1814 = vcvt.f32.s32 %v1813
    %v1815 = vcvt.f32.s32 %v1809
    %v1816 = vshll.u32 %v1815, 16
    %v1817 = vadd.s32 %v1816, %v1814
    %v1818 = vand.u32 %v1698, 65535
    %v1819 = vshra.s32 %v1698, 16
    %v1820 = vcvt.s32.f32 %v1818
    %v1821 = vcvt.s32.f32 %v1819
    %1822 = vmax.xlane.f32.xlu0 %v1821
    %v1823 = vpop.xlane.xlu0 %1822
    %vm1824 = vcmp.eq.f32.partialorder %v1821, %v1823
    %v1825 = vsel %vm1824, %v1820, -inf
    %1826 = vmax.xlane.f32.xlu0 %v1825
    %v1827 = vpop.xlane.xlu0 %1826
    %v1828 = vcvt.f32.s32 %v1827
    %v1829 = vcvt.f32.s32 %v1823
    %v1830 = vshll.u32 %v1829, 16
    %v1831 = vadd.s32 %v1830, %v1828
    %v1832 = vand.u32 %v1699, 65535
    %v1833 = vshra.s32 %v1699, 16
    %v1834 = vcvt.s32.f32 %v1832
    %v1835 = vcvt.s32.f32 %v1833
    %1836 = vmax.xlane.f32.xlu0 %v1835
    %v1837 = vpop.xlane.xlu0 %1836
    %vm1838 = vcmp.eq.f32.partialorder %v1835, %v1837
    %v1839 = vsel %vm1838, %v1834, -inf
    %1840 = vmax.xlane.f32.xlu0 %v1839
    %v1841 = vpop.xlane.xlu0 %1840
    %v1842 = vcvt.f32.s32 %v1841
    %v1843 = vcvt.f32.s32 %v1837
    %v1844 = vshll.u32 %v1843, 16
    %v1845 = vadd.s32 %v1844, %v1842
    %v1846 = vand.u32 %v1700, 65535
    %v1847 = vshra.s32 %v1700, 16
    %v1848 = vcvt.s32.f32 %v1846
    %v1849 = vcvt.s32.f32 %v1847
    %1850 = vmax.xlane.f32.xlu0 %v1849
    %v1851 = vpop.xlane.xlu0 %1850
    %vm1852 = vcmp.eq.f32.partialorder %v1849, %v1851
    %v1853 = vsel %vm1852, %v1848, -inf
    %1854 = vmax.xlane.f32.xlu0 %v1853
    %v1855 = vpop.xlane.xlu0 %1854
    %v1856 = vcvt.f32.s32 %v1855
    %v1857 = vcvt.f32.s32 %v1851
    %v1858 = vshll.u32 %v1857, 16
    %v1859 = vadd.s32 %v1858, %v1856
    %v1860 = vand.u32 %v1701, 65535
    %v1861 = vshra.s32 %v1701, 16
    %v1862 = vcvt.s32.f32 %v1860
    %v1863 = vcvt.s32.f32 %v1861
    %1864 = vmax.xlane.f32.xlu0 %v1863
    %v1865 = vpop.xlane.xlu0 %1864
    %vm1866 = vcmp.eq.f32.partialorder %v1863, %v1865
    %v1867 = vsel %vm1866, %v1862, -inf
    %1868 = vmax.xlane.f32.xlu0 %v1867
    %v1869 = vpop.xlane.xlu0 %1868
    %v1870 = vcvt.f32.s32 %v1869
    %v1871 = vcvt.f32.s32 %v1865
    %v1872 = vshll.u32 %v1871, 16
    %v1873 = vadd.s32 %v1872, %v1870
    %v1874 = vand.u32 %v1702, 65535
    %v1875 = vshra.s32 %v1702, 16
    %v1876 = vcvt.s32.f32 %v1874
    %v1877 = vcvt.s32.f32 %v1875
    %1878 = vmax.xlane.f32.xlu0 %v1877
    %v1879 = vpop.xlane.xlu0 %1878
    %vm1880 = vcmp.eq.f32.partialorder %v1877, %v1879
    %v1881 = vsel %vm1880, %v1876, -inf
    %1882 = vmax.xlane.f32.xlu0 %v1881
    %v1883 = vpop.xlane.xlu0 %1882
    %v1884 = vcvt.f32.s32 %v1883
    %v1885 = vcvt.f32.s32 %v1879
    %v1886 = vshll.u32 %v1885, 16
    %v1887 = vadd.s32 %v1886, %v1884
    %v1888 = vand.u32 %v1703, 65535
    %v1889 = vshra.s32 %v1703, 16
    %v1890 = vcvt.s32.f32 %v1888
    %v1891 = vcvt.s32.f32 %v1889
    %1892 = vmax.xlane.f32.xlu0 %v1891
    %v1893 = vpop.xlane.xlu0 %1892
    %vm1894 = vcmp.eq.f32.partialorder %v1891, %v1893
    %v1895 = vsel %vm1894, %v1890, -inf
    %1896 = vmax.xlane.f32.xlu0 %v1895
    %v1897 = vpop.xlane.xlu0 %1896
    %v1898 = vcvt.f32.s32 %v1897
    %v1899 = vcvt.f32.s32 %v1893
    %v1900 = vshll.u32 %v1899, 16
    %v1901 = vadd.s32 %v1900, %v1898
    %v1902 = vand.u32 %v1704, 65535
    %v1903 = vshra.s32 %v1704, 16
    %v1904 = vcvt.s32.f32 %v1902
    %v1905 = vcvt.s32.f32 %v1903
    %1906 = vmax.xlane.f32.xlu0 %v1905
    %v1907 = vpop.xlane.xlu0 %1906
    %vm1908 = vcmp.eq.f32.partialorder %v1905, %v1907
    %v1909 = vsel %vm1908, %v1904, -inf
    %1910 = vmax.xlane.f32.xlu0 %v1909
    %v1911 = vpop.xlane.xlu0 %1910
    %v1912 = vcvt.f32.s32 %v1911
    %v1913 = vcvt.f32.s32 %v1907
    %v1914 = vshll.u32 %v1913, 16
    %v1915 = vadd.s32 %v1914, %v1912
    %v1916 = vand.u32 %v1705, 65535
    %v1917 = vshra.s32 %v1705, 16
    %v1918 = vcvt.s32.f32 %v1916
    %v1919 = vcvt.s32.f32 %v1917
    %1920 = vmax.xlane.f32.xlu0 %v1919
    %v1921 = vpop.xlane.xlu0 %1920
    %vm1922 = vcmp.eq.f32.partialorder %v1919, %v1921
    %v1923 = vsel %vm1922, %v1918, -inf
    %1924 = vmax.xlane.f32.xlu0 %v1923
    %v1925 = vpop.xlane.xlu0 %1924
    %v1926 = vcvt.f32.s32 %v1925
    %v1927 = vcvt.f32.s32 %v1921
    %v1928 = vshll.u32 %v1927, 16
    %v1929 = vadd.s32 %v1928, %v1926
    %v1930 = vand.u32 %v1719, 127
    %v1931 = vand.u32 %v1733, 127
    %v1932 = vand.u32 %v1747, 127
    %v1933 = vand.u32 %v1761, 127
    %v1934 = vand.u32 %v1775, 127
    %v1935 = vand.u32 %v1789, 127
    %v1936 = vand.u32 %v1803, 127
    %v1937 = vand.u32 %v1817, 127
    %v1938 = vand.u32 %v1831, 127
    %v1939 = vand.u32 %v1845, 127
    %v1940 = vand.u32 %v1859, 127
    %v1941 = vand.u32 %v1873, 127
    %v1942 = vand.u32 %v1887, 127
    %v1943 = vand.u32 %v1901, 127
    %v1944 = vand.u32 %v1915, 127
    %v1945 = vand.u32 %v1929, 127
    %vm1946 = vcmask 23568
    %1947 = vst.msk [vmem:[%s7] sm:$0xff] %vm1946, %v1930
    %1948 = vst.msk [vmem:[%s7 + $0x8] sm:$0xff] %vm1946, %v1931
    %1949 = vst.msk [vmem:[%s7 + $0x10] sm:$0xff] %vm1946, %v1932
    %1950 = vst.msk [vmem:[%s7 + $0x18] sm:$0xff] %vm1946, %v1933
    %1951 = vst.msk [vmem:[%s7 + $0x20] sm:$0xff] %vm1946, %v1934
    %1952 = vst.msk [vmem:[%s7 + $0x28] sm:$0xff] %vm1946, %v1935
    %1953 = vst.msk [vmem:[%s7 + $0x30] sm:$0xff] %vm1946, %v1936
    %1954 = vst.msk [vmem:[%s7 + $0x38] sm:$0xff] %vm1946, %v1937
    %1955 = vst.msk [vmem:[%s7 + $0x40] sm:$0xff] %vm1946, %v1938
    %1956 = vst.msk [vmem:[%s7 + $0x48] sm:$0xff] %vm1946, %v1939
    %1957 = vst.msk [vmem:[%s7 + $0x50] sm:$0xff] %vm1946, %v1940
    %1958 = vst.msk [vmem:[%s7 + $0x58] sm:$0xff] %vm1946, %v1941
    %1959 = vst.msk [vmem:[%s7 + $0x60] sm:$0xff] %vm1946, %v1942
    %1960 = vst.msk [vmem:[%s7 + $0x68] sm:$0xff] %vm1946, %v1943
    %1961 = vst.msk [vmem:[%s7 + $0x70] sm:$0xff] %vm1946, %v1944
    %1962 = vst.msk [vmem:[%s7 + $0x78] sm:$0xff] %vm1946, %v1945
    %v1963 = vand.u32 %v1719, 4294967168
    %v1964 = vand.u32 %v1733, 4294967168
    %v1965 = vand.u32 %v1747, 4294967168
    %v1966 = vand.u32 %v1761, 4294967168
    %v1967 = vand.u32 %v1775, 4294967168
    %v1968 = vand.u32 %v1789, 4294967168
    %v1969 = vand.u32 %v1803, 4294967168
    %v1970 = vand.u32 %v1817, 4294967168
    %v1971 = vand.u32 %v1831, 4294967168
    %v1972 = vand.u32 %v1845, 4294967168
    %v1973 = vand.u32 %v1859, 4294967168
    %v1974 = vand.u32 %v1873, 4294967168
    %v1975 = vand.u32 %v1887, 4294967168
    %v1976 = vand.u32 %v1901, 4294967168
    %v1977 = vand.u32 %v1915, 4294967168
    %v1978 = vand.u32 %v1929, 4294967168
    %1995 = vst.msk [vmem:[%s8] sm:$0xff] %vm1946, %v1963
    %1996 = vst.msk [vmem:[%s8 + $0x8] sm:$0xff] %vm1946, %v1964
    %1997 = vst.msk [vmem:[%s8 + $0x10] sm:$0xff] %vm1946, %v1965
    %1998 = vst.msk [vmem:[%s8 + $0x18] sm:$0xff] %vm1946, %v1966
    %1999 = vst.msk [vmem:[%s8 + $0x20] sm:$0xff] %vm1946, %v1967
    %2000 = vst.msk [vmem:[%s8 + $0x28] sm:$0xff] %vm1946, %v1968
    %2001 = vst.msk [vmem:[%s8 + $0x30] sm:$0xff] %vm1946, %v1969
    %2002 = vst.msk [vmem:[%s8 + $0x38] sm:$0xff] %vm1946, %v1970
    %2003 = vst.msk [vmem:[%s8 + $0x40] sm:$0xff] %vm1946, %v1971
    %2004 = vst.msk [vmem:[%s8 + $0x48] sm:$0xff] %vm1946, %v1972
    %2005 = vst.msk [vmem:[%s8 + $0x50] sm:$0xff] %vm1946, %v1973
    %2006 = vst.msk [vmem:[%s8 + $0x58] sm:$0xff] %vm1946, %v1974
    %2007 = vst.msk [vmem:[%s8 + $0x60] sm:$0xff] %vm1946, %v1975
    %2008 = vst.msk [vmem:[%s8 + $0x68] sm:$0xff] %vm1946, %v1976
    %2009 = vst.msk [vmem:[%s8 + $0x70] sm:$0xff] %vm1946, %v1977
    %2010 = vst.msk [vmem:[%s8 + $0x78] sm:$0xff] %vm1946, %v1978
    %vm2011 = vcmp.eq.s32.totalorder %v1690, %v1719
    %vm2012 = vcmp.eq.s32.totalorder %v1691, %v1733
    %vm2013 = vcmp.eq.s32.totalorder %v1692, %v1747
    %vm2014 = vcmp.eq.s32.totalorder %v1693, %v1761
    %vm2015 = vcmp.eq.s32.totalorder %v1694, %v1775
    %vm2016 = vcmp.eq.s32.totalorder %v1695, %v1789
    %vm2017 = vcmp.eq.s32.totalorder %v1696, %v1803
    %vm2018 = vcmp.eq.s32.totalorder %v1697, %v1817
    %vm2019 = vcmp.eq.s32.totalorder %v1698, %v1831
    %vm2020 = vcmp.eq.s32.totalorder %v1699, %v1845
    %vm2021 = vcmp.eq.s32.totalorder %v1700, %v1859
    %vm2022 = vcmp.eq.s32.totalorder %v1701, %v1873
    %vm2023 = vcmp.eq.s32.totalorder %v1702, %v1887
    %vm2024 = vcmp.eq.s32.totalorder %v1703, %v1901
    %vm2025 = vcmp.eq.s32.totalorder %v1704, %v1915
    %vm2026 = vcmp.eq.s32.totalorder %v1705, %v1929
    %v2027 = vsel %vm2011, 4294967295, %v1690
    %v2028 = vsel %vm2012, 4294967295, %v1691
    %v2029 = vsel %vm2013, 4294967295, %v1692
    %v2030 = vsel %vm2014, 4294967295, %v1693
    %v2031 = vsel %vm2015, 4294967295, %v1694
    %v2032 = vsel %vm2016, 4294967295, %v1695
    %v2033 = vsel %vm2017, 4294967295, %v1696
    %v2034 = vsel %vm2018, 4294967295, %v1697
    %v2035 = vsel %vm2019, 4294967295, %v1698
    %v2036 = vsel %vm2020, 4294967295, %v1699
    %v2037 = vsel %vm2021, 4294967295, %v1700
    %v2038 = vsel %vm2022, 4294967295, %v1701
    %v2039 = vsel %vm2023, 4294967295, %v1702
    %v2040 = vsel %vm2024, 4294967295, %v1703
    %v2041 = vsel %vm2025, 4294967295, %v1704
    %v2042 = vsel %vm2026, 4294967295, %v1705
    %vm2043 = vcmp.lt.s32.totalorder %v2027, 0
    %vm2044 = vcmp.lt.s32.totalorder %v2028, 0
    %vm2045 = vcmp.lt.s32.totalorder %v2029, 0
    %vm2046 = vcmp.lt.s32.totalorder %v2030, 0
    %vm2047 = vcmp.lt.s32.totalorder %v2031, 0
    %vm2048 = vcmp.lt.s32.totalorder %v2032, 0
    %vm2049 = vcmp.lt.s32.totalorder %v2033, 0
    %vm2050 = vcmp.lt.s32.totalorder %v2034, 0
    %vm2051 = vcmp.lt.s32.totalorder %v2035, 0
    %vm2052 = vcmp.lt.s32.totalorder %v2036, 0
    %vm2053 = vcmp.lt.s32.totalorder %v2037, 0
    %vm2054 = vcmp.lt.s32.totalorder %v2038, 0
    %vm2055 = vcmp.lt.s32.totalorder %v2039, 0
    %vm2056 = vcmp.lt.s32.totalorder %v2040, 0
    %vm2057 = vcmp.lt.s32.totalorder %v2041, 0
    %vm2058 = vcmp.lt.s32.totalorder %v2042, 0
    %v2059 = vsel %vm2043, %v966, 0.0
    %v2060 = vsel %vm2044, %v967, 0.0
    %v2061 = vsel %vm2045, %v968, 0.0
    %v2062 = vsel %vm2046, %v969, 0.0
    %v2063 = vsel %vm2047, %v970, 0.0
    %v2064 = vsel %vm2048, %v971, 0.0
    %v2065 = vsel %vm2049, %v972, 0.0
    %v2066 = vsel %vm2050, %v973, 0.0
    %v2067 = vsel %vm2051, %v974, 0.0
    %v2068 = vsel %vm2052, %v975, 0.0
    %v2069 = vsel %vm2053, %v976, 0.0
    %v2070 = vsel %vm2054, %v977, 0.0
    %v2071 = vsel %vm2055, %v978, 0.0
    %v2072 = vsel %vm2056, %v979, 0.0
    %v2073 = vsel %vm2057, %v980, 0.0
    %v2074 = vsel %vm2058, %v981, 0.0
    %2075 = vst [vmem:[#allocation2] sm:$0xff] %v2059
    %2076 = vst [vmem:[#allocation2 + $0x8] sm:$0xff] %v2060
    %2077 = vst [vmem:[#allocation2 + $0x10] sm:$0xff] %v2061
    %2078 = vst [vmem:[#allocation2 + $0x18] sm:$0xff] %v2062
    %2079 = vst [vmem:[#allocation2 + $0x20] sm:$0xff] %v2063
    %2080 = vst [vmem:[#allocation2 + $0x28] sm:$0xff] %v2064
    %2081 = vst [vmem:[#allocation2 + $0x30] sm:$0xff] %v2065
    %2082 = vst [vmem:[#allocation2 + $0x38] sm:$0xff] %v2066
    %2083 = vst [vmem:[#allocation2 + $0x40] sm:$0xff] %v2067
    %2084 = vst [vmem:[#allocation2 + $0x48] sm:$0xff] %v2068
    %2085 = vst [vmem:[#allocation2 + $0x50] sm:$0xff] %v2069
    %2086 = vst [vmem:[#allocation2 + $0x58] sm:$0xff] %v2070
    %2087 = vst [vmem:[#allocation2 + $0x60] sm:$0xff] %v2071
    %2088 = vst [vmem:[#allocation2 + $0x68] sm:$0xff] %v2072
    %2089 = vst [vmem:[#allocation2 + $0x70] sm:$0xff] %v2073
    %2090 = vst [vmem:[#allocation2 + $0x78] sm:$0xff] %v2074
    // Predicated region
    $region26: #{tpu_custom_call.1} parent=1 // pred_check
      _
    $region27: #{tpu_custom_call.1} parent=1 // pred_check_branch
      %2092 = sbr.rel (0) target = $region29
    $region28: #{tpu_custom_call.1} parent=1 // pred_region
      %s2094 = ssub.s32 2048, 2048
      %2095 = vsyncadd [#allocation3], %s2094
      %s2096 = sshll.u32 [#allocation2], 4
      %s2097 = int_to_ptr.vmem [resolvable:$true] %s2096
      %2102 = dma.vmem_to_hbm [thread:$0]  %s2097, 2048, %s6, [#allocation3], 128, 128, 8
    $region29: #{tpu_custom_call.1} parent=1 // pred_fallthru
      _
    // Predicated region
    $region30: #{tpu_custom_call.1} parent=1 // pred_check
      _
    $region31: #{tpu_custom_call.1} parent=1 // pred_check_branch
      %2104 = sbr.rel (0) target = $region33
    $region32: #{tpu_custom_call.1} parent=1 // pred_region
      _
    $region33: #{tpu_custom_call.1} parent=1 // pred_fallthru
      _
    // Predicated region
    $region34: #{tpu_custom_call.1} parent=1 // pred_check
      _
    $region35: #{tpu_custom_call.1} parent=1 // pred_check_branch
      %2106 = sbr.rel (0) target = $region37
    $region36: #{tpu_custom_call.1} parent=1 // pred_region
      _
    $region37: #{tpu_custom_call.1} parent=1 // pred_fallthru
      _
    // Predicated region
    $region38: #{tpu_custom_call.1} parent=1 // pred_check
      _
    $region39: #{tpu_custom_call.1} parent=1 // pred_check_branch
      %2108 = sbr.rel (0) target = $region41
    $region40: #{tpu_custom_call.1} parent=1 // pred_region
      %2109 = dma.done [#allocation3], 2048
    $region41: #{tpu_custom_call.1} parent=1 // pred_fallthru
      _
    // Predicated region
    $region42: #{tpu_custom_call.1} parent=1 // pred_check
      _
    $region43: #{tpu_custom_call.1} parent=1 // pred_check_branch
      %2111 = sbr.rel (0) target = $region45
    $region44: #{tpu_custom_call.1} parent=1 // pred_region
      _
    $region45: #{tpu_custom_call.1} parent=1 // pred_fallthru
      _
    // Predicated region
    $region46: #{tpu_custom_call.1} parent=1 // pred_check
      _
    $region47: #{tpu_custom_call.1} parent=1 // pred_check_branch
      %2113 = sbr.rel (0) target = $region49
    $region48: #{tpu_custom_call.1} parent=1 // pred_region
      _
    $region49: #{tpu_custom_call.1} parent=1 // pred_fallthru
      _
    %2114 = vsyncpa [#allocation3], 1

</llo_original>
